<compile_context>
chip_gen: v6e
topology: v6e:2x2x1
jax: 0.10.0
libtpu: 0.0.40
codegen_flags: <defaults>
</compile_context>

<pallas_src>
import functools
import math

import jax
import jax.numpy as jnp
from jax import lax
from jax.experimental import pallas as pl
from jax.experimental.pallas import tpu as pltpu

_LN_EPS = 1e-5
_NEG_INF = -1e30  # large finite negative (safe even if masking is extended later)


def _layernorm(x, gamma, beta):
    # x: (TQ, C) f32, gamma/beta: (1, C)
    mu = jnp.mean(x, axis=-1, keepdims=True)
    xc = x - mu
    var = jnp.mean(xc * xc, axis=-1, keepdims=True)
    inv = lax.rsqrt(var + _LN_EPS)
    return xc * inv * gamma + beta


def _gelu_exact(x):
    # PyTorch nn.GELU() default = exact erf formulation.
    return 0.5 * x * (1.0 + lax.erf(x * (1.0 / math.sqrt(2.0))))


def block_kernel(
    xq_ref, xf_ref,
    wq_ref, bq_ref, wk_ref, bk_ref, wv_ref, bv_ref, wp_ref, bp_ref,
    g1_ref, be1_ref,
    w1_ref, b1_ref, w2_ref, b2_ref,
    g2_ref, be2_ref,
    o_ref,
    *, n_heads,
):
    # xq_ref: (1, TQ, C) query-tile rows (also the residual stream)
    # xf_ref: (1, T,  C) full sequence rows (for K/V)
    xq_f32 = xq_ref[0].astype(jnp.float32)        # (TQ, C)
    xq_bf = xq_ref[0].astype(jnp.bfloat16)
    xf_bf = xf_ref[0].astype(jnp.bfloat16)        # (T, C)

    TQ, C = xq_f32.shape
    T = xf_bf.shape[0]
    N = n_heads
    D = C // N

    # --- attention projections: bf16 operands, f32 accumulation ---
    q = jnp.dot(xq_bf, wq_ref[...], preferred_element_type=jnp.float32) + bq_ref[...]  # (TQ, C)
    k = jnp.dot(xf_bf, wk_ref[...], preferred_element_type=jnp.float32) + bk_ref[...]  # (T, C)
    v = jnp.dot(xf_bf, wv_ref[...], preferred_element_type=jnp.float32) + bv_ref[...]  # (T, C)

    # fold 1/sqrt(D) into q (O(TQ*C) instead of scaling the (TQ,T) scores)
    q = q * (1.0 / math.sqrt(D))

    q_bf = q.astype(jnp.bfloat16)
    k_bf = k.astype(jnp.bfloat16)
    v_bf = v.astype(jnp.bfloat16)

    # split heads -> (N, TQ, D) / (N, T, D); matches PyTorch view(T,N,D).transpose
    qh = jnp.stack([q_bf[:, h * D:(h + 1) * D] for h in range(N)], axis=0)
    kh = jnp.stack([k_bf[:, h * D:(h + 1) * D] for h in range(N)], axis=0)
    vh = jnp.stack([v_bf[:, h * D:(h + 1) * D] for h in range(N)], axis=0)

    # batched-over-heads QK^T (contract last dims; no explicit transpose)
    scores = jnp.einsum('nqd,nkd->nqk', qh, kh,
                        preferred_element_type=jnp.float32)      # (N, TQ, T)

    # causal mask at tile granularity: global row = q_off + local row
    q_off = pl.program_id(1) * TQ
    row = lax.broadcasted_iota(jnp.int32, (1, TQ, T), 1) + q_off
    col = lax.broadcasted_iota(jnp.int32, (1, TQ, T), 2)
    scores = jnp.where(col <= row, scores, _NEG_INF)

    # softmax in f32; reciprocal on the EUP slot
    m = jnp.max(scores, axis=-1, keepdims=True)
    p = jnp.exp(scores - m)
    denom = jnp.sum(p, axis=-1, keepdims=True)
    p = p * pl.reciprocal(denom, approx=True)

    att = jnp.einsum('nqk,nkd->nqd', p.astype(jnp.bfloat16), vh,
                     preferred_element_type=jnp.float32)         # (N, TQ, D)
    # merge heads back to (TQ, C) — column h*D+d <- att[h, :, d] (matches PyTorch)
    att = jnp.concatenate([att[h] for h in range(N)], axis=-1)

    att = jnp.dot(att.astype(jnp.bfloat16), wp_ref[...],
                  preferred_element_type=jnp.float32) + bp_ref[...]

    # --- residual + ln1 ---
    x1 = _layernorm(xq_f32 + att, g1_ref[...], be1_ref[...])

    # --- MLP (bf16 matmuls, exact GELU in f32) ---
    h1 = jnp.dot(x1.astype(jnp.bfloat16), w1_ref[...],
                 preferred_element_type=jnp.float32) + b1_ref[...]
    h1 = _gelu_exact(h1)
    h2 = jnp.dot(h1.astype(jnp.bfloat16), w2_ref[...],
                 preferred_element_type=jnp.float32) + b2_ref[...]

    # --- residual + ln2 ---
    x2 = _layernorm(x1 + h2, g2_ref[...], be2_ref[...])

    o_ref[0] = x2.astype(o_ref.dtype)


def block_forward(x, params, n_heads):
    B, T, C = x.shape
    H = 4 * C
    assert C % n_heads == 0

    # query tile: full T for short sequences, 128 rows otherwise
    TQ = T if T <= 128 else 128
    assert T % TQ == 0, "T must be a multiple of the query tile size"
    n_q_tiles = T // TQ

    bf16 = jnp.bfloat16
    wq = params["wq"].astype(bf16)
    wk = params["wk"].astype(bf16)
    wv = params["wv"].astype(bf16)
    wp = params["wp"].astype(bf16)
    w1 = params["w1"].astype(bf16)
    w2 = params["w2"].astype(bf16)

    def const2d(shape):
        # grid-invariant (weight / bias / LN-param) blocks
        return pl.BlockSpec(shape, lambda b, qi: (0, 0))

    in_specs = [
        pl.BlockSpec((1, TQ, C), lambda b, qi: (b, qi, 0)),  # x: query tile
        pl.BlockSpec((1, T, C), lambda b, qi: (b, 0, 0)),    # x: full sequence (K/V)
        const2d((C, C)), const2d((1, C)),                    # q_net
        const2d((C, C)), const2d((1, C)),                    # k_net
        const2d((C, C)), const2d((1, C)),                    # v_net
        const2d((C, C)), const2d((1, C)),                    # proj_net
        const2d((1, C)), const2d((1, C)),                    # ln1 gamma, beta
        const2d((C, H)), const2d((1, H)),                    # mlp fc1
        const2d((H, C)), const2d((1, C)),                    # mlp fc2
        const2d((1, C)), const2d((1, C)),                    # ln2 gamma, beta
    ]

    kernel = functools.partial(block_kernel, n_heads=n_heads)

    # VMEM budget: bf16 weights + f32 activation blocks (x2 for pipelining) + headroom,
    # clamped to the smallest per-core VMEM (v7x: 64 MiB).
    weight_bytes = 2 * (4 * C * C + 2 * C * H)
    act_bytes = 4 * (3 * T * C + 8 * TQ * C + 3 * n_heads * TQ * T + 2 * TQ * H)
    vmem_limit = int(min(max(2 * (weight_bytes + act_bytes) + (8 << 20), 32 << 20),
                         64 << 20))

    return pl.pallas_call(
        kernel,
        out_shape=jax.ShapeDtypeStruct((B, T, C), x.dtype),
        grid_spec=pltpu.PrefetchScalarGridSpec(
            num_scalar_prefetch=0,
            grid=(B, n_q_tiles),
            in_specs=in_specs,
            out_specs=pl.BlockSpec((1, TQ, C), lambda b, qi: (b, qi, 0)),
        ),
        compiler_params=pltpu.CompilerParams(
            dimension_semantics=("parallel", "parallel"),
            vmem_limit_bytes=vmem_limit,
        ),
    )(
        x, x,
        wq, params["bq"], wk, params["bk"], wv, params["bv"], wp, params["bp"],
        params["ln1_g"], params["ln1_b"],
        w1, params["b1"], w2, params["b2"],
        params["ln2_g"], params["ln2_b"],
    )


def init_params(key, h_dim):
    H = 4 * h_dim
    keys = jax.random.split(key, 8)
    s = 0.02
    return {
        "wq": s * jax.random.normal(keys[0], (h_dim, h_dim), jnp.float32),
        "bq": jnp.zeros((1, h_dim), jnp.float32),
        "wk": s * jax.random.normal(keys[1], (h_dim, h_dim), jnp.float32),
        "bk": jnp.zeros((1, h_dim), jnp.float32),
        "wv": s * jax.random.normal(keys[2], (h_dim, h_dim), jnp.float32),
        "bv": jnp.zeros((1, h_dim), jnp.float32),
        "wp": s * jax.random.normal(keys[3], (h_dim, h_dim), jnp.float32),
        "bp": jnp.zeros((1, h_dim), jnp.float32),
        "ln1_g": jnp.ones((1, h_dim), jnp.float32),
        "ln1_b": jnp.zeros((1, h_dim), jnp.float32),
        "w1": s * jax.random.normal(keys[4], (h_dim, H), jnp.float32),
        "b1": jnp.zeros((1, H), jnp.float32),
        "w2": s * jax.random.normal(keys[5], (H, h_dim), jnp.float32),
        "b2": jnp.zeros((1, h_dim), jnp.float32),
        "ln2_g": jnp.ones((1, h_dim), jnp.float32),
        "ln2_b": jnp.zeros((1, h_dim), jnp.float32),
    }


def _block_reference(x, params, n_heads):
    # Pure-JAX f32 reference mirroring the PyTorch module (post-LN).
    B, T, C = x.shape
    D = C // n_heads

    def lin(v, w, b):
        return v @ w + b

    q = lin(x, params["wq"], params["bq"]).reshape(B, T, n_heads, D).transpose(0, 2, 1, 3)
    k = lin(x, params["wk"], params["bk"]).reshape(B, T, n_heads, D).transpose(0, 2, 1, 3)
    v = lin(x, params["wv"], params["bv"]).reshape(B, T, n_heads, D).transpose(0, 2, 1, 3)
    w = (q @ jnp.swapaxes(k, -1, -2)) / math.sqrt(D)
    mask = jnp.tril(jnp.ones((T, T), bool))
    w = jnp.where(mask, w, -jnp.inf)
    w = jax.nn.softmax(w, axis=-1)
    att = (w @ v).transpose(0, 2, 1, 3).reshape(B, T, C)
    att = lin(att, params["wp"], params["bp"])

    def ln(v, g, b):
        mu = v.mean(-1, keepdims=True)
        var = ((v - mu) ** 2).mean(-1, keepdims=True)
        return (v - mu) / jnp.sqrt(var + _LN_EPS) * g + b

    x1 = ln(x + att, params["ln1_g"], params["ln1_b"])
    h = lin(x1, params["w1"], params["b1"])
    h = 0.5 * h * (1.0 + lax.erf(h / math.sqrt(2.0)))
    h = lin(h, params["w2"], params["b2"])
    return ln(x1 + h, params["ln2_g"], params["ln2_b"])


if __name__ == "__main__":
    # Small shapes consistent with the module: B=2, T=max_T=8, h_dim=32, n_heads=2.
    B, T, h_dim, n_heads = 2, 8, 32, 2

    key = jax.random.PRNGKey(0)
    k_x, k_p = jax.random.split(key)
    x = jax.random.normal(k_x, (B, T, h_dim), jnp.float32)
    params = init_params(k_p, h_dim)

    out = block_forward(x, params, n_heads)
    jax.block_until_ready(out)
    assert out.shape == (B, T, h_dim)

    # Correctness check vs f32 reference (loose tolerance: bf16 MXU operands).
    ref = _block_reference(x, params, n_heads)
    max_err = float(jnp.max(jnp.abs(out - ref)))
    assert max_err < 5e-2, f"max abs error {max_err}"

    print("KERNEL_OK")
</pallas_src>

<mosaic_0001>
module attributes {stable_mosaic.version = 11 : i64} {
  func.func @block_kernel(%arg0: i32, %arg1: i32, %arg2: memref<1x8x32xf32, #tpu.memory_space<vmem>>, %arg3: memref<1x8x32xf32, #tpu.memory_space<vmem>>, %arg4: memref<32x32xbf16, #tpu.memory_space<vmem>>, %arg5: memref<1x32xf32, #tpu.memory_space<vmem>>, %arg6: memref<32x32xbf16, #tpu.memory_space<vmem>>, %arg7: memref<1x32xf32, #tpu.memory_space<vmem>>, %arg8: memref<32x32xbf16, #tpu.memory_space<vmem>>, %arg9: memref<1x32xf32, #tpu.memory_space<vmem>>, %arg10: memref<32x32xbf16, #tpu.memory_space<vmem>>, %arg11: memref<1x32xf32, #tpu.memory_space<vmem>>, %arg12: memref<1x32xf32, #tpu.memory_space<vmem>>, %arg13: memref<1x32xf32, #tpu.memory_space<vmem>>, %arg14: memref<32x128xbf16, #tpu.memory_space<vmem>>, %arg15: memref<1x128xf32, #tpu.memory_space<vmem>>, %arg16: memref<128x32xbf16, #tpu.memory_space<vmem>>, %arg17: memref<1x32xf32, #tpu.memory_space<vmem>>, %arg18: memref<1x32xf32, #tpu.memory_space<vmem>>, %arg19: memref<1x32xf32, #tpu.memory_space<vmem>>, %arg20: memref<1x8x32xf32, #tpu.memory_space<vmem>>) attributes {dimension_semantics = [#tpu.dimension_semantics<parallel>, #tpu.dimension_semantics<parallel>], iteration_bounds = array<i64: 2, 1>, scalar_prefetch = 0 : i64, scratch_operands = 0 : i64, tpu.core_type = #tpu.core_type<tc>, window_params = [{transform_indices = @transform_0, window_bounds = array<i64: 1, 8, 32>}, {transform_indices = @transform_1, window_bounds = array<i64: 1, 8, 32>}, {pipeline_mode = #tpu.pipeline_mode<synchronous>, transform_indices = @transform_2, window_bounds = array<i64: 32, 32>}, {pipeline_mode = #tpu.pipeline_mode<synchronous>, transform_indices = @transform_3, window_bounds = array<i64: 1, 32>}, {pipeline_mode = #tpu.pipeline_mode<synchronous>, transform_indices = @transform_4, window_bounds = array<i64: 32, 32>}, {pipeline_mode = #tpu.pipeline_mode<synchronous>, transform_indices = @transform_5, window_bounds = array<i64: 1, 32>}, {pipeline_mode = #tpu.pipeline_mode<synchronous>, transform_indices = @transform_6, window_bounds = array<i64: 32, 32>}, {pipeline_mode = #tpu.pipeline_mode<synchronous>, transform_indices = @transform_7, window_bounds = array<i64: 1, 32>}, {pipeline_mode = #tpu.pipeline_mode<synchronous>, transform_indices = @transform_8, window_bounds = array<i64: 32, 32>}, {pipeline_mode = #tpu.pipeline_mode<synchronous>, transform_indices = @transform_9, window_bounds = array<i64: 1, 32>}, {pipeline_mode = #tpu.pipeline_mode<synchronous>, transform_indices = @transform_10, window_bounds = array<i64: 1, 32>}, {pipeline_mode = #tpu.pipeline_mode<synchronous>, transform_indices = @transform_11, window_bounds = array<i64: 1, 32>}, {pipeline_mode = #tpu.pipeline_mode<synchronous>, transform_indices = @transform_12, window_bounds = array<i64: 32, 128>}, {pipeline_mode = #tpu.pipeline_mode<synchronous>, transform_indices = @transform_13, window_bounds = array<i64: 1, 128>}, {pipeline_mode = #tpu.pipeline_mode<synchronous>, transform_indices = @transform_14, window_bounds = array<i64: 128, 32>}, {pipeline_mode = #tpu.pipeline_mode<synchronous>, transform_indices = @transform_15, window_bounds = array<i64: 1, 32>}, {pipeline_mode = #tpu.pipeline_mode<synchronous>, transform_indices = @transform_16, window_bounds = array<i64: 1, 32>}, {pipeline_mode = #tpu.pipeline_mode<synchronous>, transform_indices = @transform_17, window_bounds = array<i64: 1, 32>}, {transform_indices = @transform_18, window_bounds = array<i64: 1, 8, 32>}]} {
    %c0 = arith.constant 0 : index
    %c0_0 = arith.constant 0 : index
    %c0_1 = arith.constant 0 : index
    %0 = vector.load %arg2[%c0, %c0_0, %c0_1] : memref<1x8x32xf32, #tpu.memory_space<vmem>>, vector<1x8x32xf32>
    %1 = vector.shape_cast %0 : vector<1x8x32xf32> to vector<8x32xf32>
    %c0_2 = arith.constant 0 : index
    %c0_3 = arith.constant 0 : index
    %c0_4 = arith.constant 0 : index
    %2 = vector.load %arg2[%c0_2, %c0_3, %c0_4] : memref<1x8x32xf32, #tpu.memory_space<vmem>>, vector<1x8x32xf32>
    %3 = vector.shape_cast %2 : vector<1x8x32xf32> to vector<8x32xf32>
    %4 = arith.truncf %3 : vector<8x32xf32> to vector<8x32xbf16>
    %c0_5 = arith.constant 0 : index
    %c0_6 = arith.constant 0 : index
    %c0_7 = arith.constant 0 : index
    %5 = vector.load %arg3[%c0_5, %c0_6, %c0_7] : memref<1x8x32xf32, #tpu.memory_space<vmem>>, vector<1x8x32xf32>
    %6 = vector.shape_cast %5 : vector<1x8x32xf32> to vector<8x32xf32>
    %7 = arith.truncf %6 : vector<8x32xf32> to vector<8x32xbf16>
    %c0_8 = arith.constant 0 : index
    %c0_9 = arith.constant 0 : index
    %8 = vector.load %arg4[%c0_8, %c0_9] : memref<32x32xbf16, #tpu.memory_space<vmem>>, vector<32x32xbf16>
    %cst = arith.constant dense<0.000000e+00> : vector<8x32xf32>
    %9 = tpu.matmul %4, %8, %cst {dimension_numbers = #tpu.dot_dimension_numbers<[1], [0], [0], [1], [0, 0, 1, 1], [], []>} : vector<8x32xbf16>, vector<32x32xbf16>, vector<8x32xf32> -> vector<8x32xf32>
    %c0_10 = arith.constant 0 : index
    %c0_11 = arith.constant 0 : index
    %10 = vector.load %arg5[%c0_10, %c0_11] : memref<1x32xf32, #tpu.memory_space<vmem>>, vector<1x32xf32>
    %11 = vector.broadcast %10 : vector<1x32xf32> to vector<8x32xf32>
    %12 = arith.addf %9, %11 : vector<8x32xf32>
    %c0_12 = arith.constant 0 : index
    %c0_13 = arith.constant 0 : index
    %13 = vector.load %arg6[%c0_12, %c0_13] : memref<32x32xbf16, #tpu.memory_space<vmem>>, vector<32x32xbf16>
    %cst_14 = arith.constant dense<0.000000e+00> : vector<8x32xf32>
    %14 = tpu.matmul %7, %13, %cst_14 {dimension_numbers = #tpu.dot_dimension_numbers<[1], [0], [0], [1], [0, 0, 1, 1], [], []>} : vector<8x32xbf16>, vector<32x32xbf16>, vector<8x32xf32> -> vector<8x32xf32>
    %c0_15 = arith.constant 0 : index
    %c0_16 = arith.constant 0 : index
    %15 = vector.load %arg7[%c0_15, %c0_16] : memref<1x32xf32, #tpu.memory_space<vmem>>, vector<1x32xf32>
    %16 = vector.broadcast %15 : vector<1x32xf32> to vector<8x32xf32>
    %17 = arith.addf %14, %16 : vector<8x32xf32>
    %c0_17 = arith.constant 0 : index
    %c0_18 = arith.constant 0 : index
    %18 = vector.load %arg8[%c0_17, %c0_18] : memref<32x32xbf16, #tpu.memory_space<vmem>>, vector<32x32xbf16>
    %cst_19 = arith.constant dense<0.000000e+00> : vector<8x32xf32>
    %19 = tpu.matmul %7, %18, %cst_19 {dimension_numbers = #tpu.dot_dimension_numbers<[1], [0], [0], [1], [0, 0, 1, 1], [], []>} : vector<8x32xbf16>, vector<32x32xbf16>, vector<8x32xf32> -> vector<8x32xf32>
    %c0_20 = arith.constant 0 : index
    %c0_21 = arith.constant 0 : index
    %20 = vector.load %arg9[%c0_20, %c0_21] : memref<1x32xf32, #tpu.memory_space<vmem>>, vector<1x32xf32>
    %21 = vector.broadcast %20 : vector<1x32xf32> to vector<8x32xf32>
    %22 = arith.addf %19, %21 : vector<8x32xf32>
    %cst_22 = arith.constant 2.500000e-01 : f32
    %23 = vector.broadcast %cst_22 : f32 to vector<8x32xf32>
    %24 = arith.mulf %12, %23 : vector<8x32xf32>
    %25 = arith.truncf %24 : vector<8x32xf32> to vector<8x32xbf16>
    %26 = arith.truncf %17 : vector<8x32xf32> to vector<8x32xbf16>
    %27 = arith.truncf %22 : vector<8x32xf32> to vector<8x32xbf16>
    %28 = vector.extract_strided_slice %25 {offsets = [0, 0], sizes = [8, 16], strides = [1, 1]} : vector<8x32xbf16> to vector<8x16xbf16>
    %29 = vector.extract_strided_slice %25 {offsets = [0, 16], sizes = [8, 16], strides = [1, 1]} : vector<8x32xbf16> to vector<8x16xbf16>
    %30 = vector.shape_cast %28 : vector<8x16xbf16> to vector<1x8x16xbf16>
    %31 = vector.shape_cast %29 : vector<8x16xbf16> to vector<1x8x16xbf16>
    %32 = tpu.concatenate %30, %31 in 0 : vector<1x8x16xbf16>, vector<1x8x16xbf16> -> vector<2x8x16xbf16>
    %33 = vector.extract_strided_slice %26 {offsets = [0, 0], sizes = [8, 16], strides = [1, 1]} : vector<8x32xbf16> to vector<8x16xbf16>
    %34 = vector.extract_strided_slice %26 {offsets = [0, 16], sizes = [8, 16], strides = [1, 1]} : vector<8x32xbf16> to vector<8x16xbf16>
    %35 = vector.shape_cast %33 : vector<8x16xbf16> to vector<1x8x16xbf16>
    %36 = vector.shape_cast %34 : vector<8x16xbf16> to vector<1x8x16xbf16>
    %37 = tpu.concatenate %35, %36 in 0 : vector<1x8x16xbf16>, vector<1x8x16xbf16> -> vector<2x8x16xbf16>
    %38 = vector.extract_strided_slice %27 {offsets = [0, 0], sizes = [8, 16], strides = [1, 1]} : vector<8x32xbf16> to vector<8x16xbf16>
    %39 = vector.extract_strided_slice %27 {offsets = [0, 16], sizes = [8, 16], strides = [1, 1]} : vector<8x32xbf16> to vector<8x16xbf16>
    %40 = vector.shape_cast %38 : vector<8x16xbf16> to vector<1x8x16xbf16>
    %41 = vector.shape_cast %39 : vector<8x16xbf16> to vector<1x8x16xbf16>
    %42 = tpu.concatenate %40, %41 in 0 : vector<1x8x16xbf16>, vector<1x8x16xbf16> -> vector<2x8x16xbf16>
    "tpu.trace_start"() <{level = 10 : i32, message = "nqd,nkd->nqk"}> : () -> ()
    %cst_23 = arith.constant dense<0.000000e+00> : vector<2x8x8xf32>
    %43 = tpu.matmul %32, %37, %cst_23 {dimension_numbers = #tpu.dot_dimension_numbers<[2], [2], [1], [1], [0, 0, 0, 1, 1, 1], [0], [0]>} : vector<2x8x16xbf16>, vector<2x8x16xbf16>, vector<2x8x8xf32> -> vector<2x8x8xf32>
    "tpu.trace_stop"() : () -> ()
    %c8_i32 = arith.constant 8 : i32
    %44 = arith.muli %arg1, %c8_i32 : i32
    %45 = tpu.iota {dimensions = array<i32: 1>} : vector<1x8x8xi32>
    %46 = vector.broadcast %44 : i32 to vector<1x8x8xi32>
    %47 = arith.addi %45, %46 : vector<1x8x8xi32>
    %48 = tpu.iota {dimensions = array<i32: 2>} : vector<1x8x8xi32>
    %49 = arith.cmpi sle, %48, %47 : vector<1x8x8xi32>
    %cst_24 = arith.constant -1.000000e+30 : f32
    %50 = vector.shape_cast %49 : vector<1x8x8xi1> to vector<1x8x8xi1>
    %51 = vector.broadcast %50 : vector<1x8x8xi1> to vector<2x8x8xi1>
    %52 = vector.broadcast %cst_24 : f32 to vector<2x8x8xf32>
    %53 = arith.select %51, %43, %52 : vector<2x8x8xi1>, vector<2x8x8xf32>
    %cst_25 = arith.constant dense<0xFF800000> : vector<2x8xf32>
    %54 = vector.multi_reduction <maximumf>, %53, %cst_25 [2] : vector<2x8x8xf32> to vector<2x8xf32>
    %55 = vector.shape_cast %54 : vector<2x8xf32> to vector<2x8x1xf32>
    %56 = vector.broadcast %55 : vector<2x8x1xf32> to vector<2x8x8xf32>
    %57 = arith.subf %53, %56 : vector<2x8x8xf32>
    %58 = math.exp %57 : vector<2x8x8xf32>
    %cst_26 = arith.constant dense<0.000000e+00> : vector<2x8xf32>
    %59 = vector.multi_reduction <add>, %58, %cst_26 [2] : vector<2x8x8xf32> to vector<2x8xf32>
    %60 = vector.shape_cast %59 : vector<2x8xf32> to vector<2x8x1xf32>
    %61 = tpu.reciprocal %60 {approx = true} : vector<2x8x1xf32> -> vector<2x8x1xf32>
    %62 = vector.broadcast %61 : vector<2x8x1xf32> to vector<2x8x8xf32>
    %63 = arith.mulf %58, %62 : vector<2x8x8xf32>
    %64 = arith.truncf %63 : vector<2x8x8xf32> to vector<2x8x8xbf16>
    "tpu.trace_start"() <{level = 10 : i32, message = "nqk,nkd->nqd"}> : () -> ()
    %cst_27 = arith.constant dense<0.000000e+00> : vector<2x8x16xf32>
    %65 = tpu.matmul %64, %42, %cst_27 {dimension_numbers = #tpu.dot_dimension_numbers<[2], [1], [1], [2], [0, 0, 0, 1, 1, 2], [0], [0]>} : vector<2x8x8xbf16>, vector<2x8x16xbf16>, vector<2x8x16xf32> -> vector<2x8x16xf32>
    "tpu.trace_stop"() : () -> ()
    %66 = vector.extract_strided_slice %65 {offsets = [0, 0, 0], sizes = [1, 8, 16], strides = [1, 1, 1]} : vector<2x8x16xf32> to vector<1x8x16xf32>
    %67 = vector.shape_cast %66 : vector<1x8x16xf32> to vector<8x16xf32>
    %68 = vector.extract_strided_slice %65 {offsets = [1, 0, 0], sizes = [1, 8, 16], strides = [1, 1, 1]} : vector<2x8x16xf32> to vector<1x8x16xf32>
    %69 = vector.shape_cast %68 : vector<1x8x16xf32> to vector<8x16xf32>
    %70 = tpu.concatenate %67, %69 in 1 : vector<8x16xf32>, vector<8x16xf32> -> vector<8x32xf32>
    %71 = arith.truncf %70 : vector<8x32xf32> to vector<8x32xbf16>
    %c0_28 = arith.constant 0 : index
    %c0_29 = arith.constant 0 : index
    %72 = vector.load %arg10[%c0_28, %c0_29] : memref<32x32xbf16, #tpu.memory_space<vmem>>, vector<32x32xbf16>
    %cst_30 = arith.constant dense<0.000000e+00> : vector<8x32xf32>
    %73 = tpu.matmul %71, %72, %cst_30 {dimension_numbers = #tpu.dot_dimension_numbers<[1], [0], [0], [1], [0, 0, 1, 1], [], []>} : vector<8x32xbf16>, vector<32x32xbf16>, vector<8x32xf32> -> vector<8x32xf32>
    %c0_31 = arith.constant 0 : index
    %c0_32 = arith.constant 0 : index
    %74 = vector.load %arg11[%c0_31, %c0_32] : memref<1x32xf32, #tpu.memory_space<vmem>>, vector<1x32xf32>
    %75 = vector.broadcast %74 : vector<1x32xf32> to vector<8x32xf32>
    %76 = arith.addf %73, %75 : vector<8x32xf32>
    %77 = arith.addf %1, %76 : vector<8x32xf32>
    %c0_33 = arith.constant 0 : index
    %c0_34 = arith.constant 0 : index
    %78 = vector.load %arg12[%c0_33, %c0_34] : memref<1x32xf32, #tpu.memory_space<vmem>>, vector<1x32xf32>
    %c0_35 = arith.constant 0 : index
    %c0_36 = arith.constant 0 : index
    %79 = vector.load %arg13[%c0_35, %c0_36] : memref<1x32xf32, #tpu.memory_space<vmem>>, vector<1x32xf32>
    %cst_37 = arith.constant dense<0.000000e+00> : vector<8xf32>
    %80 = vector.multi_reduction <add>, %77, %cst_37 [1] : vector<8x32xf32> to vector<8xf32>
    %81 = vector.shape_cast %80 : vector<8xf32> to vector<8x1xf32>
    %cst_38 = arith.constant 3.200000e+01 : f32
    %82 = vector.broadcast %cst_38 : f32 to vector<8x1xf32>
    %83 = arith.divf %81, %82 : vector<8x1xf32>
    %84 = vector.broadcast %83 : vector<8x1xf32> to vector<8x32xf32>
    %85 = arith.subf %77, %84 : vector<8x32xf32>
    %86 = arith.mulf %85, %85 : vector<8x32xf32>
    %cst_39 = arith.constant dense<0.000000e+00> : vector<8xf32>
    %87 = vector.multi_reduction <add>, %86, %cst_39 [1] : vector<8x32xf32> to vector<8xf32>
    %88 = vector.shape_cast %87 : vector<8xf32> to vector<8x1xf32>
    %cst_40 = arith.constant 3.200000e+01 : f32
    %89 = vector.broadcast %cst_40 : f32 to vector<8x1xf32>
    %90 = arith.divf %88, %89 : vector<8x1xf32>
    %cst_41 = arith.constant 9.99999974E-6 : f32
    %91 = vector.broadcast %cst_41 : f32 to vector<8x1xf32>
    %92 = arith.addf %90, %91 : vector<8x1xf32>
    %93 = math.rsqrt %92 : vector<8x1xf32>
    %94 = vector.broadcast %93 : vector<8x1xf32> to vector<8x32xf32>
    %95 = arith.mulf %85, %94 : vector<8x32xf32>
    %96 = vector.broadcast %78 : vector<1x32xf32> to vector<8x32xf32>
    %97 = arith.mulf %95, %96 : vector<8x32xf32>
    %98 = vector.broadcast %79 : vector<1x32xf32> to vector<8x32xf32>
    %99 = arith.addf %97, %98 : vector<8x32xf32>
    %100 = arith.truncf %99 : vector<8x32xf32> to vector<8x32xbf16>
    %c0_42 = arith.constant 0 : index
    %c0_43 = arith.constant 0 : index
    %101 = vector.load %arg14[%c0_42, %c0_43] : memref<32x128xbf16, #tpu.memory_space<vmem>>, vector<32x128xbf16>
    %cst_44 = arith.constant dense<0.000000e+00> : vector<8x128xf32>
    %102 = tpu.matmul %100, %101, %cst_44 {dimension_numbers = #tpu.dot_dimension_numbers<[1], [0], [0], [1], [0, 0, 1, 1], [], []>} : vector<8x32xbf16>, vector<32x128xbf16>, vector<8x128xf32> -> vector<8x128xf32>
    %c0_45 = arith.constant 0 : index
    %c0_46 = arith.constant 0 : index
    %103 = vector.load %arg15[%c0_45, %c0_46] : memref<1x128xf32, #tpu.memory_space<vmem>>, vector<1x128xf32>
    %104 = vector.broadcast %103 : vector<1x128xf32> to vector<8x128xf32>
    %105 = arith.addf %102, %104 : vector<8x128xf32>
    %cst_47 = arith.constant 5.000000e-01 : f32
    %106 = vector.broadcast %cst_47 : f32 to vector<8x128xf32>
    %107 = arith.mulf %106, %105 : vector<8x128xf32>
    %cst_48 = arith.constant 0.707106769 : f32
    %108 = vector.broadcast %cst_48 : f32 to vector<8x128xf32>
    %109 = arith.mulf %105, %108 : vector<8x128xf32>
    %110 = math.erf %109 : vector<8x128xf32>
    %cst_49 = arith.constant 1.000000e+00 : f32
    %111 = vector.broadcast %cst_49 : f32 to vector<8x128xf32>
    %112 = arith.addf %111, %110 : vector<8x128xf32>
    %113 = arith.mulf %107, %112 : vector<8x128xf32>
    %114 = arith.truncf %113 : vector<8x128xf32> to vector<8x128xbf16>
    %c0_50 = arith.constant 0 : index
    %c0_51 = arith.constant 0 : index
    %115 = vector.load %arg16[%c0_50, %c0_51] : memref<128x32xbf16, #tpu.memory_space<vmem>>, vector<128x32xbf16>
    %cst_52 = arith.constant dense<0.000000e+00> : vector<8x32xf32>
    %116 = tpu.matmul %114, %115, %cst_52 {dimension_numbers = #tpu.dot_dimension_numbers<[1], [0], [0], [1], [0, 0, 1, 1], [], []>} : vector<8x128xbf16>, vector<128x32xbf16>, vector<8x32xf32> -> vector<8x32xf32>
    %c0_53 = arith.constant 0 : index
    %c0_54 = arith.constant 0 : index
    %117 = vector.load %arg17[%c0_53, %c0_54] : memref<1x32xf32, #tpu.memory_space<vmem>>, vector<1x32xf32>
    %118 = vector.broadcast %117 : vector<1x32xf32> to vector<8x32xf32>
    %119 = arith.addf %116, %118 : vector<8x32xf32>
    %120 = arith.addf %99, %119 : vector<8x32xf32>
    %c0_55 = arith.constant 0 : index
    %c0_56 = arith.constant 0 : index
    %121 = vector.load %arg18[%c0_55, %c0_56] : memref<1x32xf32, #tpu.memory_space<vmem>>, vector<1x32xf32>
    %c0_57 = arith.constant 0 : index
    %c0_58 = arith.constant 0 : index
    %122 = vector.load %arg19[%c0_57, %c0_58] : memref<1x32xf32, #tpu.memory_space<vmem>>, vector<1x32xf32>
    %cst_59 = arith.constant dense<0.000000e+00> : vector<8xf32>
    %123 = vector.multi_reduction <add>, %120, %cst_59 [1] : vector<8x32xf32> to vector<8xf32>
    %124 = vector.shape_cast %123 : vector<8xf32> to vector<8x1xf32>
    %cst_60 = arith.constant 3.200000e+01 : f32
    %125 = vector.broadcast %cst_60 : f32 to vector<8x1xf32>
    %126 = arith.divf %124, %125 : vector<8x1xf32>
    %127 = vector.broadcast %126 : vector<8x1xf32> to vector<8x32xf32>
    %128 = arith.subf %120, %127 : vector<8x32xf32>
    %129 = arith.mulf %128, %128 : vector<8x32xf32>
    %cst_61 = arith.constant dense<0.000000e+00> : vector<8xf32>
    %130 = vector.multi_reduction <add>, %129, %cst_61 [1] : vector<8x32xf32> to vector<8xf32>
    %131 = vector.shape_cast %130 : vector<8xf32> to vector<8x1xf32>
    %cst_62 = arith.constant 3.200000e+01 : f32
    %132 = vector.broadcast %cst_62 : f32 to vector<8x1xf32>
    %133 = arith.divf %131, %132 : vector<8x1xf32>
    %cst_63 = arith.constant 9.99999974E-6 : f32
    %134 = vector.broadcast %cst_63 : f32 to vector<8x1xf32>
    %135 = arith.addf %133, %134 : vector<8x1xf32>
    %136 = math.rsqrt %135 : vector<8x1xf32>
    %137 = vector.broadcast %136 : vector<8x1xf32> to vector<8x32xf32>
    %138 = arith.mulf %128, %137 : vector<8x32xf32>
    %139 = vector.broadcast %121 : vector<1x32xf32> to vector<8x32xf32>
    %140 = arith.mulf %138, %139 : vector<8x32xf32>
    %141 = vector.broadcast %122 : vector<1x32xf32> to vector<8x32xf32>
    %142 = arith.addf %140, %141 : vector<8x32xf32>
    %c0_64 = arith.constant 0 : index
    %c0_65 = arith.constant 0 : index
    %c0_66 = arith.constant 0 : index
    %143 = vector.load %arg20[%c0_64, %c0_65, %c0_66] : memref<1x8x32xf32, #tpu.memory_space<vmem>>, vector<1x8x32xf32>
    %144 = vector.shape_cast %143 : vector<1x8x32xf32> to vector<8x32xf32>
    %145 = vector.shape_cast %142 : vector<8x32xf32> to vector<1x8x32xf32>
    tpu.vector_store %arg20[%c0_64, %c0_65, %c0_66], %145 {strides = array<i32>} : memref<1x8x32xf32, #tpu.memory_space<vmem>>, vector<1x8x32xf32>,
    return
  }
  func.func @transform_0(%arg0: i32, %arg1: i32) -> (i32, i32, i32) {
    %c0_i32 = arith.constant 0 : i32
    %c0_i32_0 = arith.constant 0 : i32
    return %arg0, %arg1, %c0_i32 : i32, i32, i32
  }
  func.func @transform_1(%arg0: i32, %arg1: i32) -> (i32, i32, i32) {
    %c0_i32 = arith.constant 0 : i32
    %c0_i32_0 = arith.constant 0 : i32
    %c0_i32_1 = arith.constant 0 : i32
    return %arg0, %c0_i32, %c0_i32_0 : i32, i32, i32
  }
  func.func @transform_2(%arg0: i32, %arg1: i32) -> (i32, i32) {
    %c0_i32 = arith.constant 0 : i32
    %c0_i32_0 = arith.constant 0 : i32
    %c0_i32_1 = arith.constant 0 : i32
    return %c0_i32, %c0_i32_0 : i32, i32
  }
  func.func @transform_3(%arg0: i32, %arg1: i32) -> (i32, i32) {
    %c0_i32 = arith.constant 0 : i32
    %c0_i32_0 = arith.constant 0 : i32
    %c0_i32_1 = arith.constant 0 : i32
    return %c0_i32, %c0_i32_0 : i32, i32
  }
  func.func @transform_4(%arg0: i32, %arg1: i32) -> (i32, i32) {
    %c0_i32 = arith.constant 0 : i32
    %c0_i32_0 = arith.constant 0 : i32
    %c0_i32_1 = arith.constant 0 : i32
    return %c0_i32, %c0_i32_0 : i32, i32
  }
  func.func @transform_5(%arg0: i32, %arg1: i32) -> (i32, i32) {
    %c0_i32 = arith.constant 0 : i32
    %c0_i32_0 = arith.constant 0 : i32
    %c0_i32_1 = arith.constant 0 : i32
    return %c0_i32, %c0_i32_0 : i32, i32
  }
  func.func @transform_6(%arg0: i32, %arg1: i32) -> (i32, i32) {
    %c0_i32 = arith.constant 0 : i32
    %c0_i32_0 = arith.constant 0 : i32
    %c0_i32_1 = arith.constant 0 : i32
    return %c0_i32, %c0_i32_0 : i32, i32
  }
  func.func @transform_7(%arg0: i32, %arg1: i32) -> (i32, i32) {
    %c0_i32 = arith.constant 0 : i32
    %c0_i32_0 = arith.constant 0 : i32
    %c0_i32_1 = arith.constant 0 : i32
    return %c0_i32, %c0_i32_0 : i32, i32
  }
  func.func @transform_8(%arg0: i32, %arg1: i32) -> (i32, i32) {
    %c0_i32 = arith.constant 0 : i32
    %c0_i32_0 = arith.constant 0 : i32
    %c0_i32_1 = arith.constant 0 : i32
    return %c0_i32, %c0_i32_0 : i32, i32
  }
  func.func @transform_9(%arg0: i32, %arg1: i32) -> (i32, i32) {
    %c0_i32 = arith.constant 0 : i32
    %c0_i32_0 = arith.constant 0 : i32
    %c0_i32_1 = arith.constant 0 : i32
    return %c0_i32, %c0_i32_0 : i32, i32
  }
  func.func @transform_10(%arg0: i32, %arg1: i32) -> (i32, i32) {
    %c0_i32 = arith.constant 0 : i32
    %c0_i32_0 = arith.constant 0 : i32
    %c0_i32_1 = arith.constant 0 : i32
    return %c0_i32, %c0_i32_0 : i32, i32
  }
  func.func @transform_11(%arg0: i32, %arg1: i32) -> (i32, i32) {
    %c0_i32 = arith.constant 0 : i32
    %c0_i32_0 = arith.constant 0 : i32
    %c0_i32_1 = arith.constant 0 : i32
    return %c0_i32, %c0_i32_0 : i32, i32
  }
  func.func @transform_12(%arg0: i32, %arg1: i32) -> (i32, i32) {
    %c0_i32 = arith.constant 0 : i32
    %c0_i32_0 = arith.constant 0 : i32
    %c0_i32_1 = arith.constant 0 : i32
    return %c0_i32, %c0_i32_0 : i32, i32
  }
  func.func @transform_13(%arg0: i32, %arg1: i32) -> (i32, i32) {
    %c0_i32 = arith.constant 0 : i32
    %c0_i32_0 = arith.constant 0 : i32
    %c0_i32_1 = arith.constant 0 : i32
    return %c0_i32, %c0_i32_0 : i32, i32
  }
  func.func @transform_14(%arg0: i32, %arg1: i32) -> (i32, i32) {
    %c0_i32 = arith.constant 0 : i32
    %c0_i32_0 = arith.constant 0 : i32
    %c0_i32_1 = arith.constant 0 : i32
    return %c0_i32, %c0_i32_0 : i32, i32
  }
  func.func @transform_15(%arg0: i32, %arg1: i32) -> (i32, i32) {
    %c0_i32 = arith.constant 0 : i32
    %c0_i32_0 = arith.constant 0 : i32
    %c0_i32_1 = arith.constant 0 : i32
    return %c0_i32, %c0_i32_0 : i32, i32
  }
  func.func @transform_16(%arg0: i32, %arg1: i32) -> (i32, i32) {
    %c0_i32 = arith.constant 0 : i32
    %c0_i32_0 = arith.constant 0 : i32
    %c0_i32_1 = arith.constant 0 : i32
    return %c0_i32, %c0_i32_0 : i32, i32
  }
  func.func @transform_17(%arg0: i32, %arg1: i32) -> (i32, i32) {
    %c0_i32 = arith.constant 0 : i32
    %c0_i32_0 = arith.constant 0 : i32
    %c0_i32_1 = arith.constant 0 : i32
    return %c0_i32, %c0_i32_0 : i32, i32
  }
  func.func @transform_18(%arg0: i32, %arg1: i32) -> (i32, i32, i32) {
    %c0_i32 = arith.constant 0 : i32
    %c0_i32_0 = arith.constant 0 : i32
    return %arg0, %arg1, %c0_i32 : i32, i32, i32
  }
}

</mosaic_0001>

<llo_original>
// kernel: tpu_custom_call.1
$region0: #{tpu_custom_call.1}
  #allocation0 [shape = 'u32[]', space=smem, size = 0x4, offset = 0x4, fixed_abs, tag = 'smem constant byte address 0x4 - core index']
  #allocation1 [shape = 'u32[144,128]{1,0:T(1,128)}', space=vmem, size = 0x12000, scoped, tag = 'internal scratch']
  %s0 = inlined_call_operand.vmem [shape: f32[2,8,32], index: 0, kind: input, shape index: {}]
  %s1 = inlined_call_operand.vmem [shape: f32[2,8,32], index: 1, kind: input, shape index: {}]
  %s2 = inlined_call_operand.vmem [shape: bf16[32,32], index: 2, kind: input, shape index: {}]
  %s3 = inlined_call_operand.vmem [shape: f32[1,32], index: 3, kind: input, shape index: {}]
  %s4 = inlined_call_operand.vmem [shape: bf16[32,32], index: 4, kind: input, shape index: {}]
  %s5 = inlined_call_operand.vmem [shape: f32[1,32], index: 5, kind: input, shape index: {}]
  %s6 = inlined_call_operand.vmem [shape: bf16[32,32], index: 6, kind: input, shape index: {}]
  %s7 = inlined_call_operand.vmem [shape: f32[1,32], index: 7, kind: input, shape index: {}]
  %s8 = inlined_call_operand.hbm [shape: bf16[32,32], index: 8, kind: input, shape index: {}]
  %s9 = inlined_call_operand.vmem [shape: f32[1,32], index: 9, kind: input, shape index: {}]
  %s10 = inlined_call_operand.vmem [shape: f32[1,32], index: 10, kind: input, shape index: {}]
  %s11 = inlined_call_operand.vmem [shape: f32[1,32], index: 11, kind: input, shape index: {}]
  %s12 = inlined_call_operand.hbm [shape: bf16[32,128], index: 12, kind: input, shape index: {}]
  %s13 = inlined_call_operand.vmem [shape: f32[1,128], index: 13, kind: input, shape index: {}]
  %s14 = inlined_call_operand.vmem [shape: bf16[128,32], index: 14, kind: input, shape index: {}]
  %s15 = inlined_call_operand.vmem [shape: f32[1,32], index: 15, kind: input, shape index: {}]
  %s16 = inlined_call_operand.vmem [shape: f32[1,32], index: 16, kind: input, shape index: {}]
  %s17 = inlined_call_operand.vmem [shape: f32[1,32], index: 17, kind: input, shape index: {}]
  %s18 = inlined_call_operand.hbm [shape: f32[2,8,32], index: 18, kind: output, shape index: {}]
  %s19 = sld [smem:[#allocation0]]
  $region113: #{tpu_custom_call.1} parent=0
    _
  %s21 = ssub.s32 1, %s19
  %s22 = scalar_select 0, %s21, %s19
  $region1: #{tpu_custom_call.1} parent=0
    #allocation2 [shape = 'u8[8192]{0}', space=vmem, size = 0x2000, scoped, tag = 'input window, operand 8, single buffered']
    #allocation3 [shape = 's32[2]{0}', space=sflag, size = 0x8, scoped, tag = 'scoped memory for tpu_custom_call.1']
    #allocation4 [shape = 's32[2]{0}', space=sflag, size = 0x8, scoped, tag = 'scoped memory for tpu_custom_call.1']
    #allocation5 [shape = 'u8[8192]{0}', space=vmem, size = 0x2000, scoped, tag = 'input window, operand 12, single buffered']
    #allocation6 [shape = 's32[1]{0}', space=sflag, size = 0x4, scoped, tag = 'scoped memory for tpu_custom_call.1']
    #allocation7 [shape = 'u8[8192]{0}', space=vmem, size = 0x2000, scoped, tag = 'output window, operand 0']
    %23 = vsyncpa [#allocation3], 0
    %24 = vsyncpa [#allocation6], 0
    %25 = vsyncpa [#allocation4], 0
    %s26 = scalar_lea.sflag [#allocation4], 1
    %27 = vsyncpa %s26, 0
    loop: start=0, step=1, limit=4
    $region2: #{tpu_custom_call.1} parent=1 // loop_pre_header
      _
    $region3: #{tpu_custom_call.1} parent=1 // loop_header
      %s29 = sphi 0, %s33
      %p30 = scmp.ge.s32.totalorder %s29, 4
      %s36 = sphi 0, %s48
      %s37 = sphi 0, %s44
      %s38 = sphi 0, %s36
      %s39 = sphi 0, %s37
      %s40 = sphi 0, %s38
      %s41 = sphi 0, %s39
      %s53 = sphi 0, %s55
      %s56 = sphi 0, %s53
      %s57 = sphi 0, %s56
      %s73 = sphi 0, %s57
      %s79 = sphi 0, %s81
      %s82 = sphi 0, %s79
      %s83 = sphi 0, %s82
      %s99 = sphi 0, %s83
      %s103 = sphi 0, %s103
      %s105 = sphi 0, %s103
      %s106 = sphi 0, %s105
      %s120 = sphi 0, %s106
      %s124 = sphi 0, %s124
      %s126 = sphi 0, %s124
      %s127 = sphi 0, %s126
      %s141 = sphi 0, %s127
      %s145 = sphi 0, %s145
      %s147 = sphi 0, %s145
      %s148 = sphi 0, %s147
      %s162 = sphi 0, %s148
      %s166 = sphi 0, %s166
      %s168 = sphi 0, %s166
      %s169 = sphi 0, %s168
      %s183 = sphi 0, %s169
      %s187 = sphi 0, %s187
      %s189 = sphi 0, %s187
      %s190 = sphi 0, %s189
      %s204 = sphi 0, %s190
      %s208 = sphi 0, %s208
      %s210 = sphi 0, %s208
      %s211 = sphi 0, %s210
      %s225 = sphi 0, %s211
      %s229 = sphi 0, %s229
      %s231 = sphi 0, %s229
      %s232 = sphi 0, %s231
      %s246 = sphi 0, %s232
      %s250 = sphi 0, %s250
      %s252 = sphi 0, %s250
      %s253 = sphi 0, %s252
      %s267 = sphi 0, %s253
      %s271 = sphi 0, %s271
      %s273 = sphi 0, %s271
      %s274 = sphi 0, %s273
      %s288 = sphi 0, %s274
      %s292 = sphi 0, %s292
      %s294 = sphi 0, %s292
      %s295 = sphi 0, %s294
      %s309 = sphi 0, %s295
      %s313 = sphi 0, %s313
      %s315 = sphi 0, %s313
      %s316 = sphi 0, %s315
      %s330 = sphi 0, %s316
      %s334 = sphi 0, %s334
      %s336 = sphi 0, %s334
      %s337 = sphi 0, %s336
      %s351 = sphi 0, %s337
      %s355 = sphi 0, %s355
      %s357 = sphi 0, %s355
      %s358 = sphi 0, %s357
      %s372 = sphi 0, %s358
      %s376 = sphi 0, %s376
      %s378 = sphi 0, %s376
      %s379 = sphi 0, %s378
      %s393 = sphi 0, %s379
      %s397 = sphi 0, %s397
      %s399 = sphi 0, %s397
      %s400 = sphi 0, %s399
      %s414 = sphi 0, %s400
      %s418 = sphi 0, %s418
      %s420 = sphi 0, %s418
      %s421 = sphi 0, %s420
      %s435 = sphi 0, %s421
      %s443 = sphi 0, %s445
      %s446 = sphi 0, %s443
      %s447 = sphi 0, %s446
      %s463 = sphi 0, %s447
    $region4: #{tpu_custom_call.1} parent=1 // loop_header_branch
      %32 = sbr.rel (%p30) target = $region8
    $region5: #{tpu_custom_call.1} parent=1 // loop_body
      %s34 = ssub.s32 %s29, 1
      %s35 = ssub.s32 %s29, 2
      %s42 = sadd.s32 1, %s37
      %p43 = scmp.ge.s32.totalorder %s42, 1
      %s44 = scalar_select %p43, 0, %s42
      %s45 = sadd.s32 1, %s36
      %s46 = scalar_select %p43, %s45, %s36
      %p47 = scmp.ge.s32.totalorder %s46, 2
      %s48 = scalar_select %p47, 0, %s46
      %s49 = ssub.s32 %s36, %s48
      %s50 = ssub.s32 %s37, %s44
      %s51 = sor.u32 %s49, %s50
      %p52 = scmp.eq.s32.totalorder %s51, 0
      %s54 = sadd.s32 %s53, 1
      %s55 = scalar_select %p52, %s53, %s54
      %p58 = pneg %p52
      %p59 = scmp.eq.s32.totalorder %s29, 1
      %p60 = por %p58, %p59
      %p61 = scmp.ne.s32.totalorder %s53, %s56
      %p62 = scmp.eq.s32.totalorder %s29, 0
      %p63 = por %p61, %p62
      %p64 = scmp.ne.s32.totalorder %s53, %s56
      %p65 = scmp.eq.s32.totalorder %s34, 1
      %p66 = por %p64, %p65
      %p67 = scmp.ne.s32.totalorder %s56, %s57
      %p68 = scmp.eq.s32.totalorder %s34, 0
      %p69 = por %p67, %p68
      %p70 = scmp.ne.s32.totalorder %s56, %s57
      %p71 = scmp.eq.s32.totalorder %s35, 1
      %p72 = por %p70, %p71
      %p74 = scmp.ne.s32.totalorder %s57, %s73
      %p75 = scmp.eq.s32.totalorder %s35, 0
      %p76 = por %p74, %p75
      %s77 = ssub.s32 %s36, %s48
      %p78 = scmp.eq.s32.totalorder %s77, 0
      %s80 = sadd.s32 %s79, 1
      %s81 = scalar_select %p78, %s79, %s80
      %p84 = pneg %p78
      %p85 = scmp.eq.s32.totalorder %s29, 1
      %p86 = por %p84, %p85
      %p87 = scmp.ne.s32.totalorder %s79, %s82
      %p88 = scmp.eq.s32.totalorder %s29, 0
      %p89 = por %p87, %p88
      %p90 = scmp.ne.s32.totalorder %s79, %s82
      %p91 = scmp.eq.s32.totalorder %s34, 1
      %p92 = por %p90, %p91
      %p93 = scmp.ne.s32.totalorder %s82, %s83
      %p94 = scmp.eq.s32.totalorder %s34, 0
      %p95 = por %p93, %p94
      %p96 = scmp.ne.s32.totalorder %s82, %s83
      %p97 = scmp.eq.s32.totalorder %s35, 1
      %p98 = por %p96, %p97
      %p100 = scmp.ne.s32.totalorder %s83, %s99
      %p101 = scmp.eq.s32.totalorder %s35, 0
      %p102 = por %p100, %p101
      %s104 = sadd.s32 %s103, 1
      %p107 = scmp.eq.s32.totalorder %s29, 1
      %p108 = scmp.ne.s32.totalorder %s103, %s105
      %p109 = scmp.eq.s32.totalorder %s29, 0
      %p110 = por %p108, %p109
      %p111 = scmp.ne.s32.totalorder %s103, %s105
      %p112 = scmp.eq.s32.totalorder %s34, 1
      %p113 = por %p111, %p112
      %p114 = scmp.ne.s32.totalorder %s105, %s106
      %p115 = scmp.eq.s32.totalorder %s34, 0
      %p116 = por %p114, %p115
      %p117 = scmp.ne.s32.totalorder %s105, %s106
      %p118 = scmp.eq.s32.totalorder %s35, 1
      %p119 = por %p117, %p118
      %p121 = scmp.ne.s32.totalorder %s106, %s120
      %p122 = scmp.eq.s32.totalorder %s35, 0
      %p123 = por %p121, %p122
      %s125 = sadd.s32 %s124, 1
      %p128 = scmp.eq.s32.totalorder %s29, 1
      %p129 = scmp.ne.s32.totalorder %s124, %s126
      %p130 = scmp.eq.s32.totalorder %s29, 0
      %p131 = por %p129, %p130
      %p132 = scmp.ne.s32.totalorder %s124, %s126
      %p133 = scmp.eq.s32.totalorder %s34, 1
      %p134 = por %p132, %p133
      %p135 = scmp.ne.s32.totalorder %s126, %s127
      %p136 = scmp.eq.s32.totalorder %s34, 0
      %p137 = por %p135, %p136
      %p138 = scmp.ne.s32.totalorder %s126, %s127
      %p139 = scmp.eq.s32.totalorder %s35, 1
      %p140 = por %p138, %p139
      %p142 = scmp.ne.s32.totalorder %s127, %s141
      %p143 = scmp.eq.s32.totalorder %s35, 0
      %p144 = por %p142, %p143
      %s146 = sadd.s32 %s145, 1
      %p149 = scmp.eq.s32.totalorder %s29, 1
      %p150 = scmp.ne.s32.totalorder %s145, %s147
      %p151 = scmp.eq.s32.totalorder %s29, 0
      %p152 = por %p150, %p151
      %p153 = scmp.ne.s32.totalorder %s145, %s147
      %p154 = scmp.eq.s32.totalorder %s34, 1
      %p155 = por %p153, %p154
      %p156 = scmp.ne.s32.totalorder %s147, %s148
      %p157 = scmp.eq.s32.totalorder %s34, 0
      %p158 = por %p156, %p157
      %p159 = scmp.ne.s32.totalorder %s147, %s148
      %p160 = scmp.eq.s32.totalorder %s35, 1
      %p161 = por %p159, %p160
      %p163 = scmp.ne.s32.totalorder %s148, %s162
      %p164 = scmp.eq.s32.totalorder %s35, 0
      %p165 = por %p163, %p164
      %s167 = sadd.s32 %s166, 1
      %p170 = scmp.eq.s32.totalorder %s29, 1
      %p171 = scmp.ne.s32.totalorder %s166, %s168
      %p172 = scmp.eq.s32.totalorder %s29, 0
      %p173 = por %p171, %p172
      %p174 = scmp.ne.s32.totalorder %s166, %s168
      %p175 = scmp.eq.s32.totalorder %s34, 1
      %p176 = por %p174, %p175
      %p177 = scmp.ne.s32.totalorder %s168, %s169
      %p178 = scmp.eq.s32.totalorder %s34, 0
      %p179 = por %p177, %p178
      %p180 = scmp.ne.s32.totalorder %s168, %s169
      %p181 = scmp.eq.s32.totalorder %s35, 1
      %p182 = por %p180, %p181
      %p184 = scmp.ne.s32.totalorder %s169, %s183
      %p185 = scmp.eq.s32.totalorder %s35, 0
      %p186 = por %p184, %p185
      %s188 = sadd.s32 %s187, 1
      %p191 = scmp.eq.s32.totalorder %s29, 1
      %p192 = scmp.ne.s32.totalorder %s187, %s189
      %p193 = scmp.eq.s32.totalorder %s29, 0
      %p194 = por %p192, %p193
      %p195 = scmp.ne.s32.totalorder %s187, %s189
      %p196 = scmp.eq.s32.totalorder %s34, 1
      %p197 = por %p195, %p196
      %p198 = scmp.ne.s32.totalorder %s189, %s190
      %p199 = scmp.eq.s32.totalorder %s34, 0
      %p200 = por %p198, %p199
      %p201 = scmp.ne.s32.totalorder %s189, %s190
      %p202 = scmp.eq.s32.totalorder %s35, 1
      %p203 = por %p201, %p202
      %p205 = scmp.ne.s32.totalorder %s190, %s204
      %p206 = scmp.eq.s32.totalorder %s35, 0
      %p207 = por %p205, %p206
      %s209 = sadd.s32 %s208, 1
      %p212 = scmp.eq.s32.totalorder %s29, 1
      %p213 = scmp.ne.s32.totalorder %s208, %s210
      %p214 = scmp.eq.s32.totalorder %s29, 0
      %p215 = por %p213, %p214
      %p216 = scmp.ne.s32.totalorder %s208, %s210
      %p217 = scmp.eq.s32.totalorder %s34, 1
      %p218 = por %p216, %p217
      %p219 = scmp.ne.s32.totalorder %s210, %s211
      %p220 = scmp.eq.s32.totalorder %s34, 0
      %p221 = por %p219, %p220
      %p222 = scmp.ne.s32.totalorder %s210, %s211
      %p223 = scmp.eq.s32.totalorder %s35, 1
      %p224 = por %p222, %p223
      %p226 = scmp.ne.s32.totalorder %s211, %s225
      %p227 = scmp.eq.s32.totalorder %s35, 0
      %p228 = por %p226, %p227
      %s230 = sadd.s32 %s229, 1
      %p233 = scmp.eq.s32.totalorder %s29, 1
      %p234 = scmp.ne.s32.totalorder %s229, %s231
      %p235 = scmp.eq.s32.totalorder %s29, 0
      %p236 = por %p234, %p235
      %p237 = scmp.ne.s32.totalorder %s229, %s231
      %p238 = scmp.eq.s32.totalorder %s34, 1
      %p239 = por %p237, %p238
      %p240 = scmp.ne.s32.totalorder %s231, %s232
      %p241 = scmp.eq.s32.totalorder %s34, 0
      %p242 = por %p240, %p241
      %p243 = scmp.ne.s32.totalorder %s231, %s232
      %p244 = scmp.eq.s32.totalorder %s35, 1
      %p245 = por %p243, %p244
      %p247 = scmp.ne.s32.totalorder %s232, %s246
      %p248 = scmp.eq.s32.totalorder %s35, 0
      %p249 = por %p247, %p248
      %s251 = sadd.s32 %s250, 1
      %p254 = scmp.eq.s32.totalorder %s29, 1
      %p255 = scmp.ne.s32.totalorder %s250, %s252
      %p256 = scmp.eq.s32.totalorder %s29, 0
      %p257 = por %p255, %p256
      %p258 = scmp.ne.s32.totalorder %s250, %s252
      %p259 = scmp.eq.s32.totalorder %s34, 1
      %p260 = por %p258, %p259
      %p261 = scmp.ne.s32.totalorder %s252, %s253
      %p262 = scmp.eq.s32.totalorder %s34, 0
      %p263 = por %p261, %p262
      %p264 = scmp.ne.s32.totalorder %s252, %s253
      %p265 = scmp.eq.s32.totalorder %s35, 1
      %p266 = por %p264, %p265
      %p268 = scmp.ne.s32.totalorder %s253, %s267
      %p269 = scmp.eq.s32.totalorder %s35, 0
      %p270 = por %p268, %p269
      %s272 = sadd.s32 %s271, 1
      %p275 = scmp.eq.s32.totalorder %s29, 1
      %p276 = scmp.ne.s32.totalorder %s271, %s273
      %p277 = scmp.eq.s32.totalorder %s29, 0
      %p278 = por %p276, %p277
      %p279 = scmp.ne.s32.totalorder %s271, %s273
      %p280 = scmp.eq.s32.totalorder %s34, 1
      %p281 = por %p279, %p280
      %p282 = scmp.ne.s32.totalorder %s273, %s274
      %p283 = scmp.eq.s32.totalorder %s34, 0
      %p284 = por %p282, %p283
      %p285 = scmp.ne.s32.totalorder %s273, %s274
      %p286 = scmp.eq.s32.totalorder %s35, 1
      %p287 = por %p285, %p286
      %p289 = scmp.ne.s32.totalorder %s274, %s288
      %p290 = scmp.eq.s32.totalorder %s35, 0
      %p291 = por %p289, %p290
      %s293 = sadd.s32 %s292, 1
      %p296 = scmp.eq.s32.totalorder %s29, 1
      %p297 = scmp.ne.s32.totalorder %s292, %s294
      %p298 = scmp.eq.s32.totalorder %s29, 0
      %p299 = por %p297, %p298
      %p300 = scmp.ne.s32.totalorder %s292, %s294
      %p301 = scmp.eq.s32.totalorder %s34, 1
      %p302 = por %p300, %p301
      %p303 = scmp.ne.s32.totalorder %s294, %s295
      %p304 = scmp.eq.s32.totalorder %s34, 0
      %p305 = por %p303, %p304
      %p306 = scmp.ne.s32.totalorder %s294, %s295
      %p307 = scmp.eq.s32.totalorder %s35, 1
      %p308 = por %p306, %p307
      %p310 = scmp.ne.s32.totalorder %s295, %s309
      %p311 = scmp.eq.s32.totalorder %s35, 0
      %p312 = por %p310, %p311
      %s314 = sadd.s32 %s313, 1
      %p317 = scmp.eq.s32.totalorder %s29, 1
      %p318 = scmp.ne.s32.totalorder %s313, %s315
      %p319 = scmp.eq.s32.totalorder %s29, 0
      %p320 = por %p318, %p319
      %p321 = scmp.ne.s32.totalorder %s313, %s315
      %p322 = scmp.eq.s32.totalorder %s34, 1
      %p323 = por %p321, %p322
      %p324 = scmp.ne.s32.totalorder %s315, %s316
      %p325 = scmp.eq.s32.totalorder %s34, 0
      %p326 = por %p324, %p325
      %p327 = scmp.ne.s32.totalorder %s315, %s316
      %p328 = scmp.eq.s32.totalorder %s35, 1
      %p329 = por %p327, %p328
      %p331 = scmp.ne.s32.totalorder %s316, %s330
      %p332 = scmp.eq.s32.totalorder %s35, 0
      %p333 = por %p331, %p332
      %s335 = sadd.s32 %s334, 1
      %p338 = scmp.eq.s32.totalorder %s29, 1
      %p339 = scmp.ne.s32.totalorder %s334, %s336
      %p340 = scmp.eq.s32.totalorder %s29, 0
      %p341 = por %p339, %p340
      %p342 = scmp.ne.s32.totalorder %s334, %s336
      %p343 = scmp.eq.s32.totalorder %s34, 1
      %p344 = por %p342, %p343
      %p345 = scmp.ne.s32.totalorder %s336, %s337
      %p346 = scmp.eq.s32.totalorder %s34, 0
      %p347 = por %p345, %p346
      %p348 = scmp.ne.s32.totalorder %s336, %s337
      %p349 = scmp.eq.s32.totalorder %s35, 1
      %p350 = por %p348, %p349
      %p352 = scmp.ne.s32.totalorder %s337, %s351
      %p353 = scmp.eq.s32.totalorder %s35, 0
      %p354 = por %p352, %p353
      %s356 = sadd.s32 %s355, 1
      %p359 = scmp.eq.s32.totalorder %s29, 1
      %p360 = scmp.ne.s32.totalorder %s355, %s357
      %p361 = scmp.eq.s32.totalorder %s29, 0
      %p362 = por %p360, %p361
      %p363 = scmp.ne.s32.totalorder %s355, %s357
      %p364 = scmp.eq.s32.totalorder %s34, 1
      %p365 = por %p363, %p364
      %p366 = scmp.ne.s32.totalorder %s357, %s358
      %p367 = scmp.eq.s32.totalorder %s34, 0
      %p368 = por %p366, %p367
      %p369 = scmp.ne.s32.totalorder %s357, %s358
      %p370 = scmp.eq.s32.totalorder %s35, 1
      %p371 = por %p369, %p370
      %p373 = scmp.ne.s32.totalorder %s358, %s372
      %p374 = scmp.eq.s32.totalorder %s35, 0
      %p375 = por %p373, %p374
      %s377 = sadd.s32 %s376, 1
      %p380 = scmp.eq.s32.totalorder %s29, 1
      %p381 = scmp.ne.s32.totalorder %s376, %s378
      %p382 = scmp.eq.s32.totalorder %s29, 0
      %p383 = por %p381, %p382
      %p384 = scmp.ne.s32.totalorder %s376, %s378
      %p385 = scmp.eq.s32.totalorder %s34, 1
      %p386 = por %p384, %p385
      %p387 = scmp.ne.s32.totalorder %s378, %s379
      %p388 = scmp.eq.s32.totalorder %s34, 0
      %p389 = por %p387, %p388
      %p390 = scmp.ne.s32.totalorder %s378, %s379
      %p391 = scmp.eq.s32.totalorder %s35, 1
      %p392 = por %p390, %p391
      %p394 = scmp.ne.s32.totalorder %s379, %s393
      %p395 = scmp.eq.s32.totalorder %s35, 0
      %p396 = por %p394, %p395
      %s398 = sadd.s32 %s397, 1
      %p401 = scmp.eq.s32.totalorder %s29, 1
      %p402 = scmp.ne.s32.totalorder %s397, %s399
      %p403 = scmp.eq.s32.totalorder %s29, 0
      %p404 = por %p402, %p403
      %p405 = scmp.ne.s32.totalorder %s397, %s399
      %p406 = scmp.eq.s32.totalorder %s34, 1
      %p407 = por %p405, %p406
      %p408 = scmp.ne.s32.totalorder %s399, %s400
      %p409 = scmp.eq.s32.totalorder %s34, 0
      %p410 = por %p408, %p409
      %p411 = scmp.ne.s32.totalorder %s399, %s400
      %p412 = scmp.eq.s32.totalorder %s35, 1
      %p413 = por %p411, %p412
      %p415 = scmp.ne.s32.totalorder %s400, %s414
      %p416 = scmp.eq.s32.totalorder %s35, 0
      %p417 = por %p415, %p416
      %s419 = sadd.s32 %s418, 1
      %p422 = scmp.eq.s32.totalorder %s29, 1
      %p423 = scmp.ne.s32.totalorder %s418, %s420
      %p424 = scmp.eq.s32.totalorder %s29, 0
      %p425 = por %p423, %p424
      %p426 = scmp.ne.s32.totalorder %s418, %s420
      %p427 = scmp.eq.s32.totalorder %s34, 1
      %p428 = por %p426, %p427
      %p429 = scmp.ne.s32.totalorder %s420, %s421
      %p430 = scmp.eq.s32.totalorder %s34, 0
      %p431 = por %p429, %p430
      %p432 = scmp.ne.s32.totalorder %s420, %s421
      %p433 = scmp.eq.s32.totalorder %s35, 1
      %p434 = por %p432, %p433
      %p436 = scmp.ne.s32.totalorder %s421, %s435
      %p437 = scmp.eq.s32.totalorder %s35, 0
      %p438 = por %p436, %p437
      %s439 = ssub.s32 %s36, %s48
      %s440 = ssub.s32 %s37, %s44
      %s441 = sor.u32 %s439, %s440
      %p442 = scmp.eq.s32.totalorder %s441, 0
      %s444 = sadd.s32 %s443, 1
      %s445 = scalar_select %p442, %s443, %s444
      %p448 = pneg %p442
      %p449 = scmp.eq.s32.totalorder %s29, 1
      %p450 = por %p448, %p449
      %p451 = scmp.ne.s32.totalorder %s443, %s446
      %p452 = scmp.eq.s32.totalorder %s29, 0
      %p453 = por %p451, %p452
      %p454 = scmp.ne.s32.totalorder %s443, %s446
      %p455 = scmp.eq.s32.totalorder %s34, 1
      %p456 = por %p454, %p455
      %p457 = scmp.ne.s32.totalorder %s446, %s447
      %p458 = scmp.eq.s32.totalorder %s34, 0
      %p459 = por %p457, %p458
      %p460 = scmp.ne.s32.totalorder %s446, %s447
      %p461 = scmp.eq.s32.totalorder %s35, 1
      %p462 = por %p460, %p461
      %p464 = scmp.ne.s32.totalorder %s447, %s463
      %p465 = scmp.eq.s32.totalorder %s35, 0
      %p466 = por %p464, %p465
      %p467 = scmp.le.s32.totalorder 1, %s29
      %p468 = scmp.lt.s32.totalorder %s29, 3
      %p469 = pnand %p467, %p468
      %p470 = pneg %p469
      // Predicated region
      $region9: #{tpu_custom_call.1} parent=5 // pred_check
        _
      $region10: #{tpu_custom_call.1} parent=5 // pred_check_branch
        %472 = sbr.rel (%p469) target = $region12
      $region11: #{tpu_custom_call.1} parent=5 // pred_region
        %s473 = ssub.s32 %s29, 1
        // Predicated region
        $region13: #{tpu_custom_call.1} parent=11 // pred_check
          %p474 = pneg %p116
        $region14: #{tpu_custom_call.1} parent=11 // pred_check_branch
          %476 = sbr.rel (%p474) target = $region16
        $region15: #{tpu_custom_call.1} parent=11 // pred_region
          _
        $region16: #{tpu_custom_call.1} parent=11 // pred_fallthru
          _
        // Predicated region
        $region17: #{tpu_custom_call.1} parent=11 // pred_check
          %p477 = pneg %p137
        $region18: #{tpu_custom_call.1} parent=11 // pred_check_branch
          %479 = sbr.rel (%p477) target = $region20
        $region19: #{tpu_custom_call.1} parent=11 // pred_region
          _
        $region20: #{tpu_custom_call.1} parent=11 // pred_fallthru
          _
        // Predicated region
        $region21: #{tpu_custom_call.1} parent=11 // pred_check
          %p480 = pneg %p158
        $region22: #{tpu_custom_call.1} parent=11 // pred_check_branch
          %482 = sbr.rel (%p480) target = $region24
        $region23: #{tpu_custom_call.1} parent=11 // pred_region
          _
        $region24: #{tpu_custom_call.1} parent=11 // pred_fallthru
          _
        // Predicated region
        $region25: #{tpu_custom_call.1} parent=11 // pred_check
          %p483 = pneg %p179
        $region26: #{tpu_custom_call.1} parent=11 // pred_check_branch
          %485 = sbr.rel (%p483) target = $region28
        $region27: #{tpu_custom_call.1} parent=11 // pred_region
          _
        $region28: #{tpu_custom_call.1} parent=11 // pred_fallthru
          _
        // Predicated region
        $region29: #{tpu_custom_call.1} parent=11 // pred_check
          %p486 = pneg %p200
        $region30: #{tpu_custom_call.1} parent=11 // pred_check_branch
          %488 = sbr.rel (%p486) target = $region32
        $region31: #{tpu_custom_call.1} parent=11 // pred_region
          _
        $region32: #{tpu_custom_call.1} parent=11 // pred_fallthru
          _
        // Predicated region
        $region33: #{tpu_custom_call.1} parent=11 // pred_check
          %p489 = pneg %p221
        $region34: #{tpu_custom_call.1} parent=11 // pred_check_branch
          %491 = sbr.rel (%p489) target = $region36
        $region35: #{tpu_custom_call.1} parent=11 // pred_region
          _
        $region36: #{tpu_custom_call.1} parent=11 // pred_fallthru
          _
        // Predicated region
        $region37: #{tpu_custom_call.1} parent=11 // pred_check
          %p492 = pneg %p242
        $region38: #{tpu_custom_call.1} parent=11 // pred_check_branch
          %494 = sbr.rel (%p492) target = $region40
        $region39: #{tpu_custom_call.1} parent=11 // pred_region
          %s496 = ssub.s32 256, 256
          %497 = vsyncadd [#allocation3], %s496
          %s498 = sshll.u32 [#allocation2], 4
          %s499 = int_to_ptr.vmem [resolvable:$true] %s498
          %504 = dma.hbm_to_vmem [thread:$0]  %s8, 256, %s499, [#allocation3], 64, 64, 4
        $region40: #{tpu_custom_call.1} parent=11 // pred_fallthru
          _
        // Predicated region
        $region41: #{tpu_custom_call.1} parent=11 // pred_check
          %p505 = pneg %p263
        $region42: #{tpu_custom_call.1} parent=11 // pred_check_branch
          %507 = sbr.rel (%p505) target = $region44
        $region43: #{tpu_custom_call.1} parent=11 // pred_region
          _
        $region44: #{tpu_custom_call.1} parent=11 // pred_fallthru
          _
        // Predicated region
        $region45: #{tpu_custom_call.1} parent=11 // pred_check
          %p508 = pneg %p284
        $region46: #{tpu_custom_call.1} parent=11 // pred_check_branch
          %510 = sbr.rel (%p508) target = $region48
        $region47: #{tpu_custom_call.1} parent=11 // pred_region
          _
        $region48: #{tpu_custom_call.1} parent=11 // pred_fallthru
          _
        // Predicated region
        $region49: #{tpu_custom_call.1} parent=11 // pred_check
          %p511 = pneg %p305
        $region50: #{tpu_custom_call.1} parent=11 // pred_check_branch
          %513 = sbr.rel (%p511) target = $region52
        $region51: #{tpu_custom_call.1} parent=11 // pred_region
          _
        $region52: #{tpu_custom_call.1} parent=11 // pred_fallthru
          _
        // Predicated region
        $region53: #{tpu_custom_call.1} parent=11 // pred_check
          %p514 = pneg %p326
        $region54: #{tpu_custom_call.1} parent=11 // pred_check_branch
          %516 = sbr.rel (%p514) target = $region56
        $region55: #{tpu_custom_call.1} parent=11 // pred_region
          %s518 = ssub.s32 256, 256
          %519 = vsyncadd [#allocation6], %s518
          %s520 = sshll.u32 [#allocation5], 4
          %s521 = int_to_ptr.vmem [resolvable:$true] %s520
          %526 = dma.hbm_to_vmem [thread:$0]  %s12, 256, %s521, [#allocation6], 64, 64, 4
        $region56: #{tpu_custom_call.1} parent=11 // pred_fallthru
          _
        // Predicated region
        $region57: #{tpu_custom_call.1} parent=11 // pred_check
          %p527 = pneg %p347
        $region58: #{tpu_custom_call.1} parent=11 // pred_check_branch
          %529 = sbr.rel (%p527) target = $region60
        $region59: #{tpu_custom_call.1} parent=11 // pred_region
          _
        $region60: #{tpu_custom_call.1} parent=11 // pred_fallthru
          _
        // Predicated region
        $region61: #{tpu_custom_call.1} parent=11 // pred_check
          %p530 = pneg %p368
        $region62: #{tpu_custom_call.1} parent=11 // pred_check_branch
          %532 = sbr.rel (%p530) target = $region64
        $region63: #{tpu_custom_call.1} parent=11 // pred_region
          _
        $region64: #{tpu_custom_call.1} parent=11 // pred_fallthru
          _
        // Predicated region
        $region65: #{tpu_custom_call.1} parent=11 // pred_check
          %p533 = pneg %p389
        $region66: #{tpu_custom_call.1} parent=11 // pred_check_branch
          %535 = sbr.rel (%p533) target = $region68
        $region67: #{tpu_custom_call.1} parent=11 // pred_region
          _
        $region68: #{tpu_custom_call.1} parent=11 // pred_fallthru
          _
        // Predicated region
        $region69: #{tpu_custom_call.1} parent=11 // pred_check
          %p536 = pneg %p410
        $region70: #{tpu_custom_call.1} parent=11 // pred_check_branch
          %538 = sbr.rel (%p536) target = $region72
        $region71: #{tpu_custom_call.1} parent=11 // pred_region
          _
        $region72: #{tpu_custom_call.1} parent=11 // pred_fallthru
          _
        // Predicated region
        $region73: #{tpu_custom_call.1} parent=11 // pred_check
          %p539 = pneg %p431
        $region74: #{tpu_custom_call.1} parent=11 // pred_check_branch
          %541 = sbr.rel (%p539) target = $region76
        $region75: #{tpu_custom_call.1} parent=11 // pred_region
          _
        $region76: #{tpu_custom_call.1} parent=11 // pred_fallthru
          _
      $region12: #{tpu_custom_call.1} parent=5 // pred_fallthru
        _
      %p542 = scmp.lt.s32.totalorder %s29, 2
      // Predicated region
      $region77: #{tpu_custom_call.1} parent=5 // pred_check
        %p543 = pneg %p542
      $region78: #{tpu_custom_call.1} parent=5 // pred_check_branch
        %545 = sbr.rel (%p543) target = $region80
      $region79: #{tpu_custom_call.1} parent=5 // pred_region
        // Predicated region
        $region81: #{tpu_custom_call.1} parent=79 // pred_check
          %p546 = pneg %p63
        $region82: #{tpu_custom_call.1} parent=79 // pred_check_branch
          %548 = sbr.rel (%p546) target = $region84
        $region83: #{tpu_custom_call.1} parent=79 // pred_region
          %p549 = scmp.lt.s32.totalorder %s36, 1
          %s550 = scalar_select %p549, %s36, 1
          %p551 = scmp.lt.s32.totalorder %s37, 0
          %s552 = scalar_select %p551, %s37, 0
          %s553 = sadd.s32 %s552, %s550
          %s554 = smul.addr %s553, 8
          %s555 = scalar_lea.vmem %s0, %s554
        $region84: #{tpu_custom_call.1} parent=79 // pred_fallthru
          _
        // Predicated region
        $region85: #{tpu_custom_call.1} parent=79 // pred_check
          %p556 = pneg %p89
        $region86: #{tpu_custom_call.1} parent=79 // pred_check_branch
          %558 = sbr.rel (%p556) target = $region88
        $region87: #{tpu_custom_call.1} parent=79 // pred_region
          %p559 = scmp.lt.s32.totalorder %s36, 1
          %s560 = scalar_select %p559, %s36, 1
          %s561 = smul.addr %s560, 8
          %s562 = scalar_lea.vmem %s1, %s561
        $region88: #{tpu_custom_call.1} parent=79 // pred_fallthru
          _
      $region80: #{tpu_custom_call.1} parent=5 // pred_fallthru
        _
      %p563 = scmp.le.s32.totalorder 1, %s29
      %p564 = scmp.lt.s32.totalorder %s29, 3
      %p565 = pnand %p563, %p564
      %p566 = pneg %p565
      // Predicated region
      $region89: #{tpu_custom_call.1} parent=5 // pred_check
        _
      $region90: #{tpu_custom_call.1} parent=5 // pred_check_branch
        %568 = sbr.rel (%p565) target = $region92
      $region91: #{tpu_custom_call.1} parent=5 // pred_region
        %s569 = ssub.s32 %s29, 1
        // Predicated region
        $region93: #{tpu_custom_call.1} parent=91 // pred_check
          %p570 = pneg %p242
        $region94: #{tpu_custom_call.1} parent=91 // pred_check_branch
          %572 = sbr.rel (%p570) target = $region96
        $region95: #{tpu_custom_call.1} parent=91 // pred_region
          %573 = dma.done [#allocation3], 256
        $region96: #{tpu_custom_call.1} parent=91 // pred_fallthru
          _
        // Predicated region
        $region97: #{tpu_custom_call.1} parent=91 // pred_check
          %p574 = pneg %p326
        $region98: #{tpu_custom_call.1} parent=91 // pred_check_branch
          %576 = sbr.rel (%p574) target = $region100
        $region99: #{tpu_custom_call.1} parent=91 // pred_region
          %577 = dma.done [#allocation6], 256
        $region100: #{tpu_custom_call.1} parent=91 // pred_fallthru
          _
        %p578 = scmp.lt.s32.totalorder %s38, 1
        %s579 = scalar_select %p578, %s38, 1
        %p580 = scmp.lt.s32.totalorder %s39, 0
        %s581 = scalar_select %p580, %s39, 0
        %s582 = sadd.s32 %s581, %s579
        %s583 = smul.addr %s582, 8
        %s584 = scalar_lea.vmem %s0, %s583
        %p585 = pneg %p69
        %p586 = pneg %p66
        %p587 = scmp.lt.s32.totalorder %s38, 1
        %s588 = scalar_select %p587, %s38, 1
        %s589 = smul.addr %s588, 8
        %s590 = scalar_lea.vmem %s1, %s589
        %p591 = pneg %p95
        %p592 = pneg %p92
        %p593 = pneg %p116
        %p594 = pneg %p113
        %p595 = pneg %p137
        %p596 = pneg %p134
        %p597 = pneg %p158
        %p598 = pneg %p155
        %p599 = pneg %p179
        %p600 = pneg %p176
        %p601 = pneg %p200
        %p602 = pneg %p197
        %p603 = pneg %p221
        %p604 = pneg %p218
        %p605 = pneg %p242
        %p606 = pneg %p239
        %p607 = pneg %p263
        %p608 = pneg %p260
        %p609 = pneg %p284
        %p610 = pneg %p281
        %p611 = pneg %p305
        %p612 = pneg %p302
        %p613 = pneg %p326
        %p614 = pneg %p323
        %p615 = pneg %p347
        %p616 = pneg %p344
        %p617 = pneg %p368
        %p618 = pneg %p365
        %p619 = pneg %p389
        %p620 = pneg %p386
        %p621 = pneg %p410
        %p622 = pneg %p407
        %p623 = pneg %p431
        %p624 = pneg %p428
        %p625 = pneg %p459
        %p626 = pneg %p456
        %s627 = sand.u32 %s446, 1
        %s628 = scalar_lea.sflag [#allocation4], %s627
        %s629 = sand.u32 %s446, 1
        %s630 = smul.addr %s629, 8
        %s631 = scalar_lea.vmem [#allocation7], %s630
        %p632 = scmp.lt.s32.totalorder %s38, 1
        %s633 = scalar_select %p632, %s38, 1
        %p634 = scmp.lt.s32.totalorder %s39, 0
        %s635 = scalar_select %p634, %s39, 0
        %s636 = sadd.s32 %s635, %s633
        %s637 = smul.addr %s636, 8
        %s638 = scalar_lea.vmem %s0, %s637
        %p639 = scmp.lt.s32.totalorder %s38, 1
        %s640 = scalar_select %p639, %s38, 1
        %s641 = smul.addr %s640, 8
        %s642 = scalar_lea.vmem %s1, %s641
        %v644 = vld [vmem:[%s638] sm:$0xff]
        %v645 = vpack.c.bf16 %v644, %v644
        %v646 = vld [vmem:[%s642] sm:$0xff]
        %v647 = vpack.c.bf16 %v646, %v646
        %v648 = vld [vmem:[%s2] sm:$0xf]
        %v649 = vld [vmem:[%s2 + $0x4] sm:$0xf]
        %v650 = vld [vmem:[%s2 + $0x8] sm:$0xf]
        %v651 = vld [vmem:[%s2 + $0xc] sm:$0xf]
        %v652 = vld [vmem:[%s3] sm:$0x1]
        %v654 = vlaneseq
        %v655 = vshrl.u32 %v654, 7
        %v656 = vsub.s32 0, %v655
        %v657 = vrot.slane %v652, %v656
        %v663 = vunpack.c.l.b16 %v648
        %v664 = vunpack.c.l.b16 %v649
        %v665 = vunpack.c.l.b16 %v650
        %v666 = vunpack.c.l.b16 %v651
        %v667 = vpack.c.b16 %v664, %v663
        %v668 = vpack.c.b16 %v666, %v665
        %vm671 = vcmask 261120
        %v673 = vsel %vm671, %v645, 0
        %675 = vmatprep.subr.bf16.mxu0 0
        %676 = vmatpush1.bf16.msra.mxu0 0
        %677 = vmatprep.subr.bf16.mxu0 0
        %678 = vmatpush1.bf16.msra.mxu0 0
        %679 = vmatprep.subr.bf16.mxu0 0
        %680 = vmatpush1.bf16.msra.mxu0 0
        %681 = vmatprep.subr.bf16.mxu0 0
        %682 = vmatpush1.bf16.msra.mxu0 0
        %683 = vmatprep.subr.bf16.mxu0 0
        %684 = vmatpush1.bf16.msra.mxu0 0
        %685 = vmatprep.subr.bf16.mxu0 0
        %686 = vmatpush1.bf16.msra.mxu0 0
        %687 = vmatprep.subr.bf16.mxu0 0
        %688 = vmatpush1.bf16.msra.mxu0 %v668
        %689 = vmatprep.subr.bf16.mxu0 0
        %690 = vmatpush1.bf16.msra.mxu0 %v667
        %691 = vmatprep.subr.bf16.mxu0 0
        %692 = vmatpush2.bf16.msra.mxu0 0
        %693 = vmatprep.subr.bf16.mxu0 0
        %694 = vmatpush2.bf16.msra.mxu0 0
        %695 = vmatprep.subr.bf16.mxu0 0
        %696 = vmatpush2.bf16.msra.mxu0 0
        %697 = vmatprep.subr.bf16.mxu0 0
        %698 = vmatpush2.bf16.msra.mxu0 0
        %699 = vmatprep.subr.bf16.mxu0 0
        %700 = vmatpush2.bf16.msra.mxu0 0
        %701 = vmatprep.subr.bf16.mxu0 0
        %702 = vmatpush2.bf16.msra.mxu0 0
        %703 = vmatprep.subr.bf16.mxu0 0
        %704 = vmatpush2.bf16.msra.mxu0 0
        %705 = vmatprep.subr.bf16.mxu0 0
        %706 = vmatpush2.bf16.msra.mxu0 0
        %707 = vmatprep.mubr.bf16.mxu0 0
        %708 = vmatmul.mubr.bf16.gmra.mxu0 %v673
        %v709 = vpop.f32.mrf.mxu0
        %v710 = vadd.f32 %v657, %v709
        %v711 = vpop.f32.mrf.mxu0
        %v712 = vpop.f32.mrf.mxu0
        %v713 = vpop.f32.mrf.mxu0
        %714 = vdwg.mxu0
        %v715 = vld [vmem:[%s4] sm:$0xf]
        %v716 = vld [vmem:[%s4 + $0x4] sm:$0xf]
        %v717 = vld [vmem:[%s4 + $0x8] sm:$0xf]
        %v718 = vld [vmem:[%s4 + $0xc] sm:$0xf]
        %v719 = vld [vmem:[%s5] sm:$0x1]
        %v721 = vlaneseq
        %v722 = vshrl.u32 %v721, 7
        %v723 = vsub.s32 0, %v722
        %v724 = vrot.slane %v719, %v723
        %v730 = vunpack.c.l.b16 %v715
        %v731 = vunpack.c.l.b16 %v716
        %v732 = vunpack.c.l.b16 %v717
        %v733 = vunpack.c.l.b16 %v718
        %v734 = vpack.c.b16 %v731, %v730
        %v735 = vpack.c.b16 %v733, %v732
        %v739 = vsel %vm671, %v647, 0
        %741 = vmatprep.subr.bf16.mxu0 0
        %742 = vmatpush1.bf16.msra.mxu0 0
        %743 = vmatprep.subr.bf16.mxu0 0
        %744 = vmatpush1.bf16.msra.mxu0 0
        %745 = vmatprep.subr.bf16.mxu0 0
        %746 = vmatpush1.bf16.msra.mxu0 0
        %747 = vmatprep.subr.bf16.mxu0 0
        %748 = vmatpush1.bf16.msra.mxu0 0
        %749 = vmatprep.subr.bf16.mxu0 0
        %750 = vmatpush1.bf16.msra.mxu0 0
        %751 = vmatprep.subr.bf16.mxu0 0
        %752 = vmatpush1.bf16.msra.mxu0 0
        %753 = vmatprep.subr.bf16.mxu0 0
        %754 = vmatpush1.bf16.msra.mxu0 %v735
        %755 = vmatprep.subr.bf16.mxu0 0
        %756 = vmatpush1.bf16.msra.mxu0 %v734
        %757 = vmatprep.subr.bf16.mxu0 0
        %758 = vmatpush2.bf16.msra.mxu0 0
        %759 = vmatprep.subr.bf16.mxu0 0
        %760 = vmatpush2.bf16.msra.mxu0 0
        %761 = vmatprep.subr.bf16.mxu0 0
        %762 = vmatpush2.bf16.msra.mxu0 0
        %763 = vmatprep.subr.bf16.mxu0 0
        %764 = vmatpush2.bf16.msra.mxu0 0
        %765 = vmatprep.subr.bf16.mxu0 0
        %766 = vmatpush2.bf16.msra.mxu0 0
        %767 = vmatprep.subr.bf16.mxu0 0
        %768 = vmatpush2.bf16.msra.mxu0 0
        %769 = vmatprep.subr.bf16.mxu0 0
        %770 = vmatpush2.bf16.msra.mxu0 0
        %771 = vmatprep.subr.bf16.mxu0 0
        %772 = vmatpush2.bf16.msra.mxu0 0
        %773 = vmatprep.mubr.bf16.mxu0 0
        %774 = vmatmul.mubr.bf16.gmra.mxu0 %v739
        %v775 = vpop.f32.mrf.mxu0
        %v776 = vadd.f32 %v724, %v775
        %v777 = vpop.f32.mrf.mxu0
        %v778 = vpop.f32.mrf.mxu0
        %v779 = vpop.f32.mrf.mxu0
        %780 = vdwg.mxu0
        %v781 = vld [vmem:[%s6] sm:$0xf]
        %v782 = vld [vmem:[%s6 + $0x4] sm:$0xf]
        %v783 = vld [vmem:[%s6 + $0x8] sm:$0xf]
        %v784 = vld [vmem:[%s6 + $0xc] sm:$0xf]
        %v785 = vld [vmem:[%s7] sm:$0x1]
        %v787 = vlaneseq
        %v788 = vshrl.u32 %v787, 7
        %v789 = vsub.s32 0, %v788
        %v790 = vrot.slane %v785, %v789
        %v796 = vunpack.c.l.b16 %v781
        %v797 = vunpack.c.l.b16 %v782
        %v798 = vunpack.c.l.b16 %v783
        %v799 = vunpack.c.l.b16 %v784
        %v800 = vpack.c.b16 %v797, %v796
        %v801 = vpack.c.b16 %v799, %v798
        %804 = vmatprep.subr.bf16.mxu0 0
        %805 = vmatpush1.bf16.msra.mxu0 0
        %806 = vmatprep.subr.bf16.mxu0 0
        %807 = vmatpush1.bf16.msra.mxu0 0
        %808 = vmatprep.subr.bf16.mxu0 0
        %809 = vmatpush1.bf16.msra.mxu0 0
        %810 = vmatprep.subr.bf16.mxu0 0
        %811 = vmatpush1.bf16.msra.mxu0 0
        %812 = vmatprep.subr.bf16.mxu0 0
        %813 = vmatpush1.bf16.msra.mxu0 0
        %814 = vmatprep.subr.bf16.mxu0 0
        %815 = vmatpush1.bf16.msra.mxu0 0
        %816 = vmatprep.subr.bf16.mxu0 0
        %817 = vmatpush1.bf16.msra.mxu0 %v801
        %818 = vmatprep.subr.bf16.mxu0 0
        %819 = vmatpush1.bf16.msra.mxu0 %v800
        %820 = vmatprep.subr.bf16.mxu0 0
        %821 = vmatpush2.bf16.msra.mxu0 0
        %822 = vmatprep.subr.bf16.mxu0 0
        %823 = vmatpush2.bf16.msra.mxu0 0
        %824 = vmatprep.subr.bf16.mxu0 0
        %825 = vmatpush2.bf16.msra.mxu0 0
        %826 = vmatprep.subr.bf16.mxu0 0
        %827 = vmatpush2.bf16.msra.mxu0 0
        %828 = vmatprep.subr.bf16.mxu0 0
        %829 = vmatpush2.bf16.msra.mxu0 0
        %830 = vmatprep.subr.bf16.mxu0 0
        %831 = vmatpush2.bf16.msra.mxu0 0
        %832 = vmatprep.subr.bf16.mxu0 0
        %833 = vmatpush2.bf16.msra.mxu0 0
        %834 = vmatprep.subr.bf16.mxu0 0
        %835 = vmatpush2.bf16.msra.mxu0 0
        %836 = vmatprep.mubr.bf16.mxu0 0
        %837 = vmatmul.mubr.bf16.gmra.mxu0 %v739
        %v838 = vpop.f32.mrf.mxu0
        %v839 = vadd.f32 %v790, %v838
        %v840 = vpop.f32.mrf.mxu0
        %v841 = vpop.f32.mrf.mxu0
        %v842 = vpop.f32.mrf.mxu0
        %843 = vdwg.mxu0
        %v844 = vmul.f32 %v710, 0.25
        %v845 = vpack.c.bf16 %v844, %v844
        %v846 = vpack.c.bf16 %v776, %v776
        %v847 = vpack.c.bf16 %v839, %v839
        %849 = vrot.lane.b32.xlu0 %v845, 112
        %v850 = vpop.permute.xlu0 %849
        %852 = vrot.lane.b32.xlu0 %v846, 112
        %v853 = vpop.permute.xlu0 %852
        %855 = vrot.lane.b32.xlu0 %v847, 112
        %v856 = vpop.permute.xlu0 %855
        %vm857 = vcmask 130048
        %v859 = vsel %vm857, %v845, 0
        %v862 = vsel %vm857, %v846, 0
        %864 = vmatprep.subr.bf16.mxu0 0
        %865 = vmatpush1.bf16.xpose.msra.mxu0 0
        %866 = vmatprep.subr.bf16.mxu0 0
        %867 = vmatpush1.bf16.xpose.msra.mxu0 0
        %868 = vmatprep.subr.bf16.mxu0 0
        %869 = vmatpush1.bf16.xpose.msra.mxu0 0
        %870 = vmatprep.subr.bf16.mxu0 0
        %871 = vmatpush1.bf16.xpose.msra.mxu0 0
        %872 = vmatprep.subr.bf16.mxu0 0
        %873 = vmatpush1.bf16.xpose.msra.mxu0 0
        %874 = vmatprep.subr.bf16.mxu0 0
        %875 = vmatpush1.bf16.xpose.msra.mxu0 0
        %876 = vmatprep.subr.bf16.mxu0 0
        %877 = vmatpush1.bf16.xpose.msra.mxu0 0
        %878 = vmatprep.subr.bf16.mxu0 0
        %879 = vmatpush1.bf16.xpose.msra.mxu0 %v862
        %880 = vmatprep.subr.bf16.mxu0 0
        %881 = vmatpush2.bf16.xpose.msra.mxu0 0
        %882 = vmatprep.subr.bf16.mxu0 0
        %883 = vmatpush2.bf16.xpose.msra.mxu0 0
        %884 = vmatprep.subr.bf16.mxu0 0
        %885 = vmatpush2.bf16.xpose.msra.mxu0 0
        %886 = vmatprep.subr.bf16.mxu0 0
        %887 = vmatpush2.bf16.xpose.msra.mxu0 0
        %888 = vmatprep.subr.bf16.mxu0 0
        %889 = vmatpush2.bf16.xpose.msra.mxu0 0
        %890 = vmatprep.subr.bf16.mxu0 0
        %891 = vmatpush2.bf16.xpose.msra.mxu0 0
        %892 = vmatprep.subr.bf16.mxu0 0
        %893 = vmatpush2.bf16.xpose.msra.mxu0 0
        %894 = vmatprep.subr.bf16.mxu0 0
        %895 = vmatpush2.bf16.xpose.msra.mxu0 0
        %896 = vmatprep.mubr.bf16.mxu0 0
        %897 = vmatmul.mubr.bf16.gmra.mxu0 %v859
        %v898 = vpop.f32.mrf.mxu0
        %v899 = vadd.f32 0.0, %v898
        %v900 = vpop.f32.mrf.mxu0
        %v901 = vpop.f32.mrf.mxu0
        %v902 = vpop.f32.mrf.mxu0
        %903 = vdwg.mxu0
        %v905 = vsel %vm857, %v850, 0
        %v908 = vsel %vm857, %v853, 0
        %910 = vmatprep.subr.bf16.mxu0 0
        %911 = vmatpush1.bf16.xpose.msra.mxu0 0
        %912 = vmatprep.subr.bf16.mxu0 0
        %913 = vmatpush1.bf16.xpose.msra.mxu0 0
        %914 = vmatprep.subr.bf16.mxu0 0
        %915 = vmatpush1.bf16.xpose.msra.mxu0 0
        %916 = vmatprep.subr.bf16.mxu0 0
        %917 = vmatpush1.bf16.xpose.msra.mxu0 0
        %918 = vmatprep.subr.bf16.mxu0 0
        %919 = vmatpush1.bf16.xpose.msra.mxu0 0
        %920 = vmatprep.subr.bf16.mxu0 0
        %921 = vmatpush1.bf16.xpose.msra.mxu0 0
        %922 = vmatprep.subr.bf16.mxu0 0
        %923 = vmatpush1.bf16.xpose.msra.mxu0 0
        %924 = vmatprep.subr.bf16.mxu0 0
        %925 = vmatpush1.bf16.xpose.msra.mxu0 %v908
        %926 = vmatprep.subr.bf16.mxu0 0
        %927 = vmatpush2.bf16.xpose.msra.mxu0 0
        %928 = vmatprep.subr.bf16.mxu0 0
        %929 = vmatpush2.bf16.xpose.msra.mxu0 0
        %930 = vmatprep.subr.bf16.mxu0 0
        %931 = vmatpush2.bf16.xpose.msra.mxu0 0
        %932 = vmatprep.subr.bf16.mxu0 0
        %933 = vmatpush2.bf16.xpose.msra.mxu0 0
        %934 = vmatprep.subr.bf16.mxu0 0
        %935 = vmatpush2.bf16.xpose.msra.mxu0 0
        %936 = vmatprep.subr.bf16.mxu0 0
        %937 = vmatpush2.bf16.xpose.msra.mxu0 0
        %938 = vmatprep.subr.bf16.mxu0 0
        %939 = vmatpush2.bf16.xpose.msra.mxu0 0
        %940 = vmatprep.subr.bf16.mxu0 0
        %941 = vmatpush2.bf16.xpose.msra.mxu0 0
        %942 = vmatprep.mubr.bf16.mxu0 0
        %943 = vmatmul.mubr.bf16.gmra.mxu0 %v905
        %v944 = vpop.f32.mrf.mxu0
        %v945 = vadd.f32 0.0, %v944
        %v946 = vpop.f32.mrf.mxu0
        %v947 = vpop.f32.mrf.mxu0
        %v948 = vpop.f32.mrf.mxu0
        %949 = vdwg.mxu0
        %s950 = smul.u32 %s39, 8
        %v951 = vlaneseq
        %v952 = vshrl.u32 %v951, 7
        %v953 = vstv %s950
        %v954 = vadd.s32 %v952, %v953
        %v955 = vlaneseq
        %v956 = vand.u32 %v955, 127
        %vm957 = vcmp.le.s32.totalorder %v956, %v954
        %v958 = vsel %vm957, 1, 0
        %vm959 = vcmp.eq.s32.totalorder %v958, 1
        %v960 = vsel %vm959, %v899, -1e+30
        %v961 = vsel %vm959, %v945, -1e+30
        %vm962 = vcmask 64512
        %v963 = vsel %vm962, %v960, -inf
        %964 = vmax.xlane.f32.xlu0 %v963
        %v965 = vpop.xlane.xlu0 %964
        %v966 = vsel %vm962, %v961, -inf
        %967 = vmax.xlane.f32.xlu0 %v966
        %v968 = vpop.xlane.xlu0 %967
        %v969 = vsub.f32 %v960, %v965
        %v970 = vsub.f32 %v961, %v968
        %v971 = vmul.f32 %v969, 1.442695
        %v972 = vpow.pop %v971
        %v973 = vmul.f32 %v970, 1.442695
        %v974 = vpow.pop %v973
        %v975 = vsel %vm962, %v972, 0.0
        %976 = vadd.xlane.f32.xlu0 %v975
        %v977 = vpop.xlane.xlu0 %976
        %v978 = vsel %vm962, %v974, 0.0
        %979 = vadd.xlane.f32.xlu0 %v978
        %v980 = vpop.xlane.xlu0 %979
        %v981 = vrcp.pop %v977
        %v982 = vrcp.pop %v980
        %v983 = vmul.f32 %v972, %v981
        %v984 = vmul.f32 %v974, %v982
        %v985 = vpack.c.bf16 %v983, %v983
        %v986 = vpack.c.bf16 %v984, %v984
        %v988 = vsel %vm962, %v985, 0
        %vm990 = vcmask 1043456
        %v992 = vsel %vm990, %v847, 0
        %994 = vmatprep.subr.bf16.mxu0 0
        %995 = vmatpush1.bf16.msra.mxu0 0
        %996 = vmatprep.subr.bf16.mxu0 0
        %997 = vmatpush1.bf16.msra.mxu0 0
        %998 = vmatprep.subr.bf16.mxu0 0
        %999 = vmatpush1.bf16.msra.mxu0 0
        %1000 = vmatprep.subr.bf16.mxu0 0
        %1001 = vmatpush1.bf16.msra.mxu0 0
        %1002 = vmatprep.subr.bf16.mxu0 0
        %1003 = vmatpush1.bf16.msra.mxu0 0
        %1004 = vmatprep.subr.bf16.mxu0 0
        %1005 = vmatpush1.bf16.msra.mxu0 0
        %1006 = vmatprep.subr.bf16.mxu0 0
        %1007 = vmatpush1.bf16.msra.mxu0 0
        %1008 = vmatprep.subr.bf16.mxu0 0
        %1009 = vmatpush1.bf16.msra.mxu0 %v992
        %1010 = vmatprep.subr.bf16.mxu0 0
        %1011 = vmatpush2.bf16.msra.mxu0 0
        %1012 = vmatprep.subr.bf16.mxu0 0
        %1013 = vmatpush2.bf16.msra.mxu0 0
        %1014 = vmatprep.subr.bf16.mxu0 0
        %1015 = vmatpush2.bf16.msra.mxu0 0
        %1016 = vmatprep.subr.bf16.mxu0 0
        %1017 = vmatpush2.bf16.msra.mxu0 0
        %1018 = vmatprep.subr.bf16.mxu0 0
        %1019 = vmatpush2.bf16.msra.mxu0 0
        %1020 = vmatprep.subr.bf16.mxu0 0
        %1021 = vmatpush2.bf16.msra.mxu0 0
        %1022 = vmatprep.subr.bf16.mxu0 0
        %1023 = vmatpush2.bf16.msra.mxu0 0
        %1024 = vmatprep.subr.bf16.mxu0 0
        %1025 = vmatpush2.bf16.msra.mxu0 0
        %1026 = vmatprep.mubr.bf16.mxu0 0
        %1027 = vmatmul.mubr.bf16.gmra.mxu0 %v988
        %v1028 = vpop.f32.mrf.mxu0
        %v1029 = vadd.f32 0.0, %v1028
        %v1030 = vpop.f32.mrf.mxu0
        %v1031 = vpop.f32.mrf.mxu0
        %v1032 = vpop.f32.mrf.mxu0
        %1033 = vdwg.mxu0
        %v1035 = vsel %vm962, %v986, 0
        %v1038 = vsel %vm990, %v856, 0
        %1040 = vmatprep.subr.bf16.mxu0 0
        %1041 = vmatpush1.bf16.msra.mxu0 0
        %1042 = vmatprep.subr.bf16.mxu0 0
        %1043 = vmatpush1.bf16.msra.mxu0 0
        %1044 = vmatprep.subr.bf16.mxu0 0
        %1045 = vmatpush1.bf16.msra.mxu0 0
        %1046 = vmatprep.subr.bf16.mxu0 0
        %1047 = vmatpush1.bf16.msra.mxu0 0
        %1048 = vmatprep.subr.bf16.mxu0 0
        %1049 = vmatpush1.bf16.msra.mxu0 0
        %1050 = vmatprep.subr.bf16.mxu0 0
        %1051 = vmatpush1.bf16.msra.mxu0 0
        %1052 = vmatprep.subr.bf16.mxu0 0
        %1053 = vmatpush1.bf16.msra.mxu0 0
        %1054 = vmatprep.subr.bf16.mxu0 0
        %1055 = vmatpush1.bf16.msra.mxu0 %v1038
        %1056 = vmatprep.subr.bf16.mxu0 0
        %1057 = vmatpush2.bf16.msra.mxu0 0
        %1058 = vmatprep.subr.bf16.mxu0 0
        %1059 = vmatpush2.bf16.msra.mxu0 0
        %1060 = vmatprep.subr.bf16.mxu0 0
        %1061 = vmatpush2.bf16.msra.mxu0 0
        %1062 = vmatprep.subr.bf16.mxu0 0
        %1063 = vmatpush2.bf16.msra.mxu0 0
        %1064 = vmatprep.subr.bf16.mxu0 0
        %1065 = vmatpush2.bf16.msra.mxu0 0
        %1066 = vmatprep.subr.bf16.mxu0 0
        %1067 = vmatpush2.bf16.msra.mxu0 0
        %1068 = vmatprep.subr.bf16.mxu0 0
        %1069 = vmatpush2.bf16.msra.mxu0 0
        %1070 = vmatprep.subr.bf16.mxu0 0
        %1071 = vmatpush2.bf16.msra.mxu0 0
        %1072 = vmatprep.mubr.bf16.mxu0 0
        %1073 = vmatmul.mubr.bf16.gmra.mxu0 %v1035
        %v1074 = vpop.f32.mrf.mxu0
        %v1075 = vadd.f32 0.0, %v1074
        %v1076 = vpop.f32.mrf.mxu0
        %v1077 = vpop.f32.mrf.mxu0
        %v1078 = vpop.f32.mrf.mxu0
        %1079 = vdwg.mxu0
        %1081 = vrot.lane.b32.xlu0 %v1075, 16
        %v1082 = vpop.permute.xlu0 %1081
        %v1084 = vsel %vm857, %v1029, %v1082
        %v1085 = vpack.c.bf16 %v1084, %v1084
        %v1086 = vld [vmem:[#allocation2] sm:$0xf]
        %v1087 = vld [vmem:[#allocation2 + $0x4] sm:$0xf]
        %v1088 = vld [vmem:[#allocation2 + $0x8] sm:$0xf]
        %v1089 = vld [vmem:[#allocation2 + $0xc] sm:$0xf]
        %v1090 = vld [vmem:[%s9] sm:$0x1]
        %v1092 = vlaneseq
        %v1093 = vshrl.u32 %v1092, 7
        %v1094 = vsub.s32 0, %v1093
        %v1095 = vrot.slane %v1090, %v1094
        %v1101 = vunpack.c.l.b16 %v1086
        %v1102 = vunpack.c.l.b16 %v1087
        %v1103 = vunpack.c.l.b16 %v1088
        %v1104 = vunpack.c.l.b16 %v1089
        %v1105 = vpack.c.b16 %v1102, %v1101
        %v1106 = vpack.c.b16 %v1104, %v1103
        %v1110 = vsel %vm671, %v1085, 0
        %1112 = vmatprep.subr.bf16.mxu0 0
        %1113 = vmatpush1.bf16.msra.mxu0 0
        %1114 = vmatprep.subr.bf16.mxu0 0
        %1115 = vmatpush1.bf16.msra.mxu0 0
        %1116 = vmatprep.subr.bf16.mxu0 0
        %1117 = vmatpush1.bf16.msra.mxu0 0
        %1118 = vmatprep.subr.bf16.mxu0 0
        %1119 = vmatpush1.bf16.msra.mxu0 0
        %1120 = vmatprep.subr.bf16.mxu0 0
        %1121 = vmatpush1.bf16.msra.mxu0 0
        %1122 = vmatprep.subr.bf16.mxu0 0
        %1123 = vmatpush1.bf16.msra.mxu0 0
        %1124 = vmatprep.subr.bf16.mxu0 0
        %1125 = vmatpush1.bf16.msra.mxu0 %v1106
        %1126 = vmatprep.subr.bf16.mxu0 0
        %1127 = vmatpush1.bf16.msra.mxu0 %v1105
        %1128 = vmatprep.subr.bf16.mxu0 0
        %1129 = vmatpush2.bf16.msra.mxu0 0
        %1130 = vmatprep.subr.bf16.mxu0 0
        %1131 = vmatpush2.bf16.msra.mxu0 0
        %1132 = vmatprep.subr.bf16.mxu0 0
        %1133 = vmatpush2.bf16.msra.mxu0 0
        %1134 = vmatprep.subr.bf16.mxu0 0
        %1135 = vmatpush2.bf16.msra.mxu0 0
        %1136 = vmatprep.subr.bf16.mxu0 0
        %1137 = vmatpush2.bf16.msra.mxu0 0
        %1138 = vmatprep.subr.bf16.mxu0 0
        %1139 = vmatpush2.bf16.msra.mxu0 0
        %1140 = vmatprep.subr.bf16.mxu0 0
        %1141 = vmatpush2.bf16.msra.mxu0 0
        %1142 = vmatprep.subr.bf16.mxu0 0
        %1143 = vmatpush2.bf16.msra.mxu0 0
        %1144 = vmatprep.mubr.bf16.mxu0 0
        %1145 = vmatmul.mubr.bf16.gmra.mxu0 %v1110
        %v1146 = vpop.f32.mrf.mxu0
        %v1147 = vadd.f32 %v1095, %v1146
        %v1148 = vpop.f32.mrf.mxu0
        %v1149 = vpop.f32.mrf.mxu0
        %v1150 = vpop.f32.mrf.mxu0
        %1151 = vdwg.mxu0
        %v1152 = vadd.f32 %v644, %v1147
        %v1153 = vld [vmem:[%s10] sm:$0x1]
        %v1154 = vld [vmem:[%s11] sm:$0x1]
        %v1155 = vsel %vm671, %v1152, 0.0
        %1156 = vadd.xlane.f32.xlu0 %v1155
        %v1157 = vpop.xlane.xlu0 %1156
        %v1158 = vrcp.pop 32.0
        %v1159 = vmul.f32 %v1157, %v1158
        %v1160 = vsub.f32 %v1152, %v1159
        %v1161 = vmul.f32 %v1160, %v1160
        %v1162 = vsel %vm671, %v1161, 0.0
        %1163 = vadd.xlane.f32.xlu0 %v1162
        %v1164 = vpop.xlane.xlu0 %1163
        %v1165 = vmul.f32 %v1164, %v1158
        %v1166 = vadd.f32 %v1165, 1e-05
        %v1167 = vrsqrt.pop %v1166
        %v1168 = vmul.f32 %v1160, %v1167
        %v1170 = vlaneseq
        %v1171 = vshrl.u32 %v1170, 7
        %v1172 = vsub.s32 0, %v1171
        %v1173 = vrot.slane %v1153, %v1172
        %v1175 = vmul.f32 %v1168, %v1173
        %v1177 = vlaneseq
        %v1178 = vshrl.u32 %v1177, 7
        %v1179 = vsub.s32 0, %v1178
        %v1180 = vrot.slane %v1154, %v1179
        %v1182 = vadd.f32 %v1175, %v1180
        %v1183 = vpack.c.bf16 %v1182, %v1182
        %v1184 = vld [vmem:[#allocation5] sm:$0xf]
        %v1185 = vld [vmem:[#allocation5 + $0x4] sm:$0xf]
        %v1186 = vld [vmem:[#allocation5 + $0x8] sm:$0xf]
        %v1187 = vld [vmem:[#allocation5 + $0xc] sm:$0xf]
        %v1188 = vld [vmem:[%s13] sm:$0x1]
        %v1190 = vlaneseq
        %v1191 = vshrl.u32 %v1190, 7
        %v1192 = vsub.s32 0, %v1191
        %v1193 = vrot.slane %v1188, %v1192
        %v1199 = vunpack.c.l.b16 %v1184
        %v1200 = vunpack.c.l.b16 %v1185
        %v1201 = vunpack.c.l.b16 %v1186
        %v1202 = vunpack.c.l.b16 %v1187
        %v1203 = vpack.c.b16 %v1200, %v1199
        %v1204 = vpack.c.b16 %v1202, %v1201
        %v1208 = vsel %vm671, %v1183, 0
        %1210 = vmatprep.subr.bf16.mxu0 0
        %1211 = vmatpush1.bf16.msra.mxu0 0
        %1212 = vmatprep.subr.bf16.mxu0 0
        %1213 = vmatpush1.bf16.msra.mxu0 0
        %1214 = vmatprep.subr.bf16.mxu0 0
        %1215 = vmatpush1.bf16.msra.mxu0 0
        %1216 = vmatprep.subr.bf16.mxu0 0
        %1217 = vmatpush1.bf16.msra.mxu0 0
        %1218 = vmatprep.subr.bf16.mxu0 0
        %1219 = vmatpush1.bf16.msra.mxu0 0
        %1220 = vmatprep.subr.bf16.mxu0 0
        %1221 = vmatpush1.bf16.msra.mxu0 0
        %1222 = vmatprep.subr.bf16.mxu0 0
        %1223 = vmatpush1.bf16.msra.mxu0 %v1204
        %1224 = vmatprep.subr.bf16.mxu0 0
        %1225 = vmatpush1.bf16.msra.mxu0 %v1203
        %1226 = vmatprep.subr.bf16.mxu0 0
        %1227 = vmatpush2.bf16.msra.mxu0 0
        %1228 = vmatprep.subr.bf16.mxu0 0
        %1229 = vmatpush2.bf16.msra.mxu0 0
        %1230 = vmatprep.subr.bf16.mxu0 0
        %1231 = vmatpush2.bf16.msra.mxu0 0
        %1232 = vmatprep.subr.bf16.mxu0 0
        %1233 = vmatpush2.bf16.msra.mxu0 0
        %1234 = vmatprep.subr.bf16.mxu0 0
        %1235 = vmatpush2.bf16.msra.mxu0 0
        %1236 = vmatprep.subr.bf16.mxu0 0
        %1237 = vmatpush2.bf16.msra.mxu0 0
        %1238 = vmatprep.subr.bf16.mxu0 0
        %1239 = vmatpush2.bf16.msra.mxu0 0
        %1240 = vmatprep.subr.bf16.mxu0 0
        %1241 = vmatpush2.bf16.msra.mxu0 0
        %1242 = vmatprep.mubr.bf16.mxu0 0
        %1243 = vmatmul.mubr.bf16.gmra.mxu0 %v1208
        %v1244 = vpop.f32.mrf.mxu0
        %v1245 = vadd.f32 %v1193, %v1244
        %v1246 = vpop.f32.mrf.mxu0
        %v1247 = vpop.f32.mrf.mxu0
        %v1248 = vpop.f32.mrf.mxu0
        %1249 = vdwg.mxu0
        %v1250 = vmul.f32 %v1245, 0.5
        %v1251 = vmul.f32 %v1245, 0.70710677
        %v1252 = verf.f32.pop %v1251
        %v1253 = vadd.f32 %v1252, 1.0
        %v1254 = vmul.f32 %v1250, %v1253
        %v1255 = vpack.c.bf16 %v1254, %v1254
        %v1256 = vld [vmem:[%s14] sm:$0xf]
        %v1257 = vld [vmem:[%s14 + $0x4] sm:$0xf]
        %v1258 = vld [vmem:[%s14 + $0x8] sm:$0xf]
        %v1259 = vld [vmem:[%s14 + $0xc] sm:$0xf]
        %v1260 = vld [vmem:[%s14 + $0x10] sm:$0xf]
        %v1261 = vld [vmem:[%s14 + $0x14] sm:$0xf]
        %v1262 = vld [vmem:[%s14 + $0x18] sm:$0xf]
        %v1263 = vld [vmem:[%s14 + $0x1c] sm:$0xf]
        %v1264 = vld [vmem:[%s14 + $0x20] sm:$0xf]
        %v1265 = vld [vmem:[%s14 + $0x24] sm:$0xf]
        %v1266 = vld [vmem:[%s14 + $0x28] sm:$0xf]
        %v1267 = vld [vmem:[%s14 + $0x2c] sm:$0xf]
        %v1268 = vld [vmem:[%s14 + $0x30] sm:$0xf]
        %v1269 = vld [vmem:[%s14 + $0x34] sm:$0xf]
        %v1270 = vld [vmem:[%s14 + $0x38] sm:$0xf]
        %v1271 = vld [vmem:[%s14 + $0x3c] sm:$0xf]
        %v1272 = vld [vmem:[%s15] sm:$0x1]
        %v1274 = vlaneseq
        %v1275 = vshrl.u32 %v1274, 7
        %v1276 = vsub.s32 0, %v1275
        %v1277 = vrot.slane %v1272, %v1276
        %v1295 = vunpack.c.l.b16 %v1256
        %v1296 = vunpack.c.l.b16 %v1257
        %v1297 = vunpack.c.l.b16 %v1258
        %v1298 = vunpack.c.l.b16 %v1259
        %v1299 = vunpack.c.l.b16 %v1260
        %v1300 = vunpack.c.l.b16 %v1261
        %v1301 = vunpack.c.l.b16 %v1262
        %v1302 = vunpack.c.l.b16 %v1263
        %v1303 = vunpack.c.l.b16 %v1264
        %v1304 = vunpack.c.l.b16 %v1265
        %v1305 = vunpack.c.l.b16 %v1266
        %v1306 = vunpack.c.l.b16 %v1267
        %v1307 = vunpack.c.l.b16 %v1268
        %v1308 = vunpack.c.l.b16 %v1269
        %v1309 = vunpack.c.l.b16 %v1270
        %v1310 = vunpack.c.l.b16 %v1271
        %v1311 = vpack.c.b16 %v1296, %v1295
        %v1312 = vpack.c.b16 %v1298, %v1297
        %v1313 = vpack.c.b16 %v1300, %v1299
        %v1314 = vpack.c.b16 %v1302, %v1301
        %v1315 = vpack.c.b16 %v1304, %v1303
        %v1316 = vpack.c.b16 %v1306, %v1305
        %v1317 = vpack.c.b16 %v1308, %v1307
        %v1318 = vpack.c.b16 %v1310, %v1309
        %1327 = vmatprep.subr.bf16.mxu0 0
        %1328 = vmatpush1.bf16.msra.mxu0 %v1318
        %1329 = vmatprep.subr.bf16.mxu0 0
        %1330 = vmatpush1.bf16.msra.mxu0 %v1317
        %1331 = vmatprep.subr.bf16.mxu0 0
        %1332 = vmatpush1.bf16.msra.mxu0 %v1316
        %1333 = vmatprep.subr.bf16.mxu0 0
        %1334 = vmatpush1.bf16.msra.mxu0 %v1315
        %1335 = vmatprep.subr.bf16.mxu0 0
        %1336 = vmatpush1.bf16.msra.mxu0 %v1314
        %1337 = vmatprep.subr.bf16.mxu0 0
        %1338 = vmatpush1.bf16.msra.mxu0 %v1313
        %1339 = vmatprep.subr.bf16.mxu0 0
        %1340 = vmatpush1.bf16.msra.mxu0 %v1312
        %1341 = vmatprep.subr.bf16.mxu0 0
        %1342 = vmatpush1.bf16.msra.mxu0 %v1311
        %1343 = vmatprep.subr.bf16.mxu0 0
        %1344 = vmatpush2.bf16.msra.mxu0 0
        %1345 = vmatprep.subr.bf16.mxu0 0
        %1346 = vmatpush2.bf16.msra.mxu0 0
        %1347 = vmatprep.subr.bf16.mxu0 0
        %1348 = vmatpush2.bf16.msra.mxu0 0
        %1349 = vmatprep.subr.bf16.mxu0 0
        %1350 = vmatpush2.bf16.msra.mxu0 0
        %1351 = vmatprep.subr.bf16.mxu0 0
        %1352 = vmatpush2.bf16.msra.mxu0 0
        %1353 = vmatprep.subr.bf16.mxu0 0
        %1354 = vmatpush2.bf16.msra.mxu0 0
        %1355 = vmatprep.subr.bf16.mxu0 0
        %1356 = vmatpush2.bf16.msra.mxu0 0
        %1357 = vmatprep.subr.bf16.mxu0 0
        %1358 = vmatpush2.bf16.msra.mxu0 0
        %1359 = vmatprep.mubr.bf16.mxu0 0
        %1360 = vmatmul.mubr.bf16.gmra.mxu0 %v1255
        %v1361 = vpop.f32.mrf.mxu0
        %v1362 = vadd.f32 %v1277, %v1361
        %v1363 = vpop.f32.mrf.mxu0
        %v1364 = vpop.f32.mrf.mxu0
        %v1365 = vpop.f32.mrf.mxu0
        %1366 = vdwg.mxu0
        %v1367 = vadd.f32 %v1182, %v1362
        %v1368 = vld [vmem:[%s16] sm:$0x1]
        %v1369 = vld [vmem:[%s17] sm:$0x1]
        %v1370 = vsel %vm671, %v1367, 0.0
        %1371 = vadd.xlane.f32.xlu0 %v1370
        %v1372 = vpop.xlane.xlu0 %1371
        %v1373 = vmul.f32 %v1372, %v1158
        %v1374 = vsub.f32 %v1367, %v1373
        %v1375 = vmul.f32 %v1374, %v1374
        %v1376 = vsel %vm671, %v1375, 0.0
        %1377 = vadd.xlane.f32.xlu0 %v1376
        %v1378 = vpop.xlane.xlu0 %1377
        %v1379 = vmul.f32 %v1378, %v1158
        %v1380 = vadd.f32 %v1379, 1e-05
        %v1381 = vrsqrt.pop %v1380
        %v1382 = vmul.f32 %v1374, %v1381
        %v1384 = vlaneseq
        %v1385 = vshrl.u32 %v1384, 7
        %v1386 = vsub.s32 0, %v1385
        %v1387 = vrot.slane %v1368, %v1386
        %v1389 = vmul.f32 %v1382, %v1387
        %v1391 = vlaneseq
        %v1392 = vshrl.u32 %v1391, 7
        %v1393 = vsub.s32 0, %v1392
        %v1394 = vrot.slane %v1369, %v1393
        %v1396 = vadd.f32 %v1389, %v1394
        %1397 = vst.msk [vmem:[%s631] sm:$0xff] %vm671, %v1396
        %s1398 = sand.u32 %s446, 1
        %s1399 = scalar_lea.sflag [#allocation4], %s1398
        %s1400 = sand.u32 %s446, 1
        %s1401 = smul.addr %s1400, 8
        %s1402 = scalar_lea.vmem [#allocation7], %s1401
        // Predicated region
        $region101: #{tpu_custom_call.1} parent=91 // pred_check
          %p1403 = pneg %p456
        $region102: #{tpu_custom_call.1} parent=91 // pred_check_branch
          %1405 = sbr.rel (%p1403) target = $region104
        $region103: #{tpu_custom_call.1} parent=91 // pred_region
          %s1407 = ssub.s32 128, 128
          %1408 = vsyncadd %s1399, %s1407
          %s1409 = sadd.s32 %s39, %s38
          %s1410 = smul.addr %s1409, 128
          %s1411 = scalar_lea.hbm %s18, %s1410
          %s1413 = sshll.u32 %s1402, 4
          %s1414 = int_to_ptr.vmem [resolvable:$true] %s1413
          %1416 = dma.vmem_to_hbm [thread:$0]  %s1414, 128, %s1411, %s1399
        $region104: #{tpu_custom_call.1} parent=91 // pred_fallthru
          _
      $region92: #{tpu_custom_call.1} parent=5 // pred_fallthru
        _
      %p1417 = scmp.le.s32.totalorder 2, %s29
      // Predicated region
      $region105: #{tpu_custom_call.1} parent=5 // pred_check
        %p1418 = pneg %p1417
      $region106: #{tpu_custom_call.1} parent=5 // pred_check_branch
        %1420 = sbr.rel (%p1418) target = $region108
      $region107: #{tpu_custom_call.1} parent=5 // pred_region
        %s1421 = ssub.s32 %s29, 2
        // Predicated region
        $region109: #{tpu_custom_call.1} parent=107 // pred_check
          %p1422 = pneg %p462
        $region110: #{tpu_custom_call.1} parent=107 // pred_check_branch
          %1424 = sbr.rel (%p1422) target = $region112
        $region111: #{tpu_custom_call.1} parent=107 // pred_region
          %s1425 = sand.u32 %s447, 1
          %s1426 = scalar_lea.sflag [#allocation4], %s1425
          %s1427 = sand.u32 %s447, 1
          %s1428 = smul.addr %s1427, 8
          %s1429 = scalar_lea.vmem [#allocation7], %s1428
          %1430 = dma.done %s1426, 128
        $region112: #{tpu_custom_call.1} parent=107 // pred_fallthru
          _
      $region108: #{tpu_custom_call.1} parent=5 // pred_fallthru
        _
    $region6: #{tpu_custom_call.1} parent=1 // loop_footer
      %s33 = sadd.s32 1, %s29
    $region7: #{tpu_custom_call.1} parent=1 // loop_footer_branch
      %28 = sbr.rel target = $region3
    $region8: #{tpu_custom_call.1} parent=1 // loop_exit
      _
    %1431 = vsyncpa [#allocation3], 1
    %s1432 = scalar_lea.sflag [#allocation3], 1
    %1433 = vsyncpa %s1432, 1
    %1434 = vsyncpa [#allocation6], 1
    %1435 = vsyncpa [#allocation4], 1
    %s1436 = scalar_lea.sflag [#allocation4], 1
    %1437 = vsyncpa %s1436, 1

</llo_original>
